<compile_context>
chip_gen: v7x
topology: tpu7x:2x2x1
jax: 0.10.0
libtpu: 0.0.40
codegen_flags: <defaults>
</compile_context>

<pallas_src>
import functools
import math

import jax
import jax.numpy as jnp
import numpy as np
from jax.experimental import pallas as pl
from jax.experimental.pallas import tpu as pltpu


def _dae_kernel(x_ref, w1_ref, b1_ref, w2_ref, b2_ref, inv_ref, emb_ref,
                out_ref, acc_ref, *, bm):
    k = pl.program_id(0)            # n_items (reduction) tile index -- outer
    i = pl.program_id(1)            # batch tile index               -- inner
    row = pl.multiple_of(i * bm, bm)
    rows = pl.ds(row, bm)

    @pl.when(k == 0)
    def _init():
        acc_ref[rows, :] = jnp.zeros((bm, acc_ref.shape[1]), dtype=jnp.float32)

    # Partial x @ W1 on the MXU (bf16 inputs, f32 accumulation).
    acc_ref[rows, :] += jnp.dot(x_ref[...], w1_ref[...],
                                preferred_element_type=jnp.float32)

    # TODO(synk): nn.Dropout is identity in eval mode; training-mode dropout
    # (pltpu PRNG masks on h and on the embedding) is not implemented here.

    @pl.when(k == pl.num_programs(0) - 1)
    def _finalize():
        # F.normalize fused as a post-scale of the accumulated matmul.
        h1 = jnp.tanh(acc_ref[rows, :] * inv_ref[rows, :] + b1_ref[...])
        # Layer 1: Linear(256, 128) in f32 (tiny), no tanh, + user embedding.
        h2 = jnp.dot(h1, w2_ref[...],
                     preferred_element_type=jnp.float32) + b2_ref[...]
        out_ref[rows, :] = (h2 + emb_ref[rows, :]).astype(out_ref.dtype)


def _round_up(v, m):
    return ((v + m - 1) // m) * m


@functools.partial(jax.jit, static_argnames=("bm", "bk"))
def dae_forward(x, idx, w1, b1, w2, b2, user_emb_table, *, bm=None, bk=None):
    """DAE forward.  Embedding gather + exact-f32 row-norm are wrapper glue; the
    normalize/matmul hot path streams x and W1 through a (K, batch) grid."""
    if x.ndim < 2:
        x = x[None, :]
    B, n_items = x.shape
    H1 = w1.shape[1]          # 256
    H2 = w2.shape[1]          # 128

    # ---- wrapper glue (fused by XLA with the bf16 cast of x) -----------------
    xf = x.astype(jnp.float32)
    # torch F.normalize: x / max(||x||_2, 1e-12)  ==  x * rsqrt(max(sum(x^2),1e-24))
    sq = jnp.sum(jnp.square(xf), axis=-1, keepdims=True)
    inv_norm = jax.lax.rsqrt(jnp.maximum(sq, 1e-24))
    emb = jnp.take(user_emb_table, jnp.reshape(idx, (-1,)),
                   axis=0).astype(jnp.float32)

    # ---- tile sizing ---------------------------------------------------------
    if bm is None:
        bm = min(256, _round_up(B, 16))      # fill MXU M dim, bf16 sublane packing
    bm = max(16, _round_up(bm, 16))
    B_pad = _round_up(B, bm)
    if bk is None:
        bk = min(8192, _round_up(n_items, 128))
    bk = max(128, _round_up(bk, 128))
    K_pad = _round_up(n_items, bk)
    grid = (K_pad // bk, B_pad // bm)        # K outer (reduction), batch inner

    # ---- zero padding (inert for x@W1; padded rows sliced off at the end) ----
    x_lp = jnp.pad(x.astype(jnp.bfloat16),
                   ((0, B_pad - B), (0, K_pad - n_items)))
    w1_lp = jnp.pad(w1.astype(jnp.bfloat16), ((0, K_pad - n_items), (0, 0)))
    inv_norm = jnp.pad(inv_norm, ((0, B_pad - B), (0, 0)))
    emb = jnp.pad(emb, ((0, B_pad - B), (0, 0)))
    b1_r = jnp.reshape(b1, (1, H1)).astype(jnp.float32)
    b2_r = jnp.reshape(b2, (1, H2)).astype(jnp.float32)
    w2_f = w2.astype(jnp.float32)

    # Rough VMEM need: double-buffered x & W1 tiles + resident per-row state.
    est = (2 * bm * bk * 2 + 2 * bk * H1 * 2
           + B_pad * (H1 * 4 + 2 * H2 * 4 + 2 * 4)
           + H1 * H2 * 4 + (H1 + H2) * 4)
    vmem_limit = int(min(max(32 << 20, est + (8 << 20)), 64 << 20))

    out = pl.pallas_call(
        functools.partial(_dae_kernel, bm=bm),
        out_shape=jax.ShapeDtypeStruct((B_pad, H2), jnp.float32),
        grid_spec=pltpu.PrefetchScalarGridSpec(
            num_scalar_prefetch=0,
            grid=grid,
            in_specs=[
                pl.BlockSpec((bm, bk), lambda k, i: (i, k)),     # x (streamed once)
                pl.BlockSpec((bk, H1), lambda k, i: (k, 0)),     # W1 (streamed once)
                pl.BlockSpec((1, H1), lambda k, i: (0, 0)),      # b1 (resident)
                pl.BlockSpec((H1, H2), lambda k, i: (0, 0)),     # W2 (resident)
                pl.BlockSpec((1, H2), lambda k, i: (0, 0)),      # b2 (resident)
                pl.BlockSpec((B_pad, 1), lambda k, i: (0, 0)),   # 1/||x|| (resident)
                pl.BlockSpec((B_pad, H2), lambda k, i: (0, 0)),  # user embedding
            ],
            out_specs=pl.BlockSpec((B_pad, H2), lambda k, i: (0, 0)),
            scratch_shapes=[
                pltpu.VMEM((B_pad, H1), jnp.float32),  # x @ W1 accumulator (all rows)
            ],
        ),
        compiler_params=pltpu.CompilerParams(
            dimension_semantics=("arbitrary", "arbitrary"),
            vmem_limit_bytes=vmem_limit,
        ),
    )(x_lp, w1_lp, b1_r, w2_f, b2_r, inv_norm, emb)
    return out[:B], None, None


def init_params(key, n_items, n_users):
    """Deterministic parameter init mirroring DAE.init_weights / xavier embedding."""
    enc_dims = [n_items, 256, 128]
    keys = jax.random.split(key, 8)

    # Linear layers: weight ~ N(0, sqrt(2/(fan_in+fan_out))), bias ~ N(0, 0.001).
    # Weights stored transposed (in, out); W1 in bf16 (MXU storage), W2 in f32.
    def linear_init(kw, kb, d_in, d_out, w_dtype):
        std = math.sqrt(2.0 / (d_in + d_out))
        w = (jax.random.normal(kw, (d_in, d_out), jnp.float32) * std).astype(w_dtype)
        b = jax.random.normal(kb, (1, d_out), jnp.float32) * 0.001
        return w, b

    w1, b1 = linear_init(keys[0], keys[1], enc_dims[0], enc_dims[1], jnp.bfloat16)
    w2, b2 = linear_init(keys[2], keys[3], enc_dims[1], enc_dims[2], jnp.float32)

    # Embedding: xavier_uniform over (n_users, 128).
    bound = math.sqrt(6.0 / (n_users + 128))
    emb_table = jax.random.uniform(keys[4], (n_users, 128), jnp.float32,
                                   minval=-bound, maxval=bound)
    return w1, b1, w2, b2, emb_table


def reference_forward(x, idx, w1, b1, w2, b2, emb_table):
    """Pure-JAX f32 reference of the PyTorch forward (eval mode)."""
    if x.ndim < 2:
        x = x[None, :]
    w1f = w1.astype(jnp.float32)
    w2f = w2.astype(jnp.float32)
    norm = jnp.sqrt(jnp.sum(x * x, axis=-1, keepdims=True))
    h = x / jnp.maximum(norm, 1e-12)
    h = jnp.tanh(h @ w1f + b1)
    h = h @ w2f + b2
    h = h + emb_table[jnp.reshape(idx, (-1,))]
    return h


if __name__ == "__main__":
    # Small shapes consistent with the module; n_items=4000 / B=30 deliberately
    # exercise the zero-padding path (K_pad=4096, B_pad=32).
    n_items, n_users, B = 4000, 16, 30

    key = jax.random.PRNGKey(0)
    k_param, k_x, k_idx = jax.random.split(key, 3)

    w1, b1, w2, b2, emb_table = init_params(k_param, n_items, n_users)

    # Binary interaction vectors (implicit feedback) + user indices (B, 1).
    x = (jax.random.uniform(k_x, (B, n_items), jnp.float32) > 0.8).astype(jnp.float32)
    idx = jax.random.randint(k_idx, (B, 1), 0, n_users, dtype=jnp.int32)

    ref = reference_forward(x, idx, w1, b1, w2, b2, emb_table)

    # Small explicit tiles to exercise the (K outer, batch inner) grid: grid=(4, 2).
    out, _, _ = dae_forward(x, idx, w1, b1, w2, b2, emb_table, bm=16, bk=1024)
    out = jax.block_until_ready(out)
    np.testing.assert_allclose(np.asarray(out), np.asarray(ref), rtol=1e-2, atol=1e-2)

    # Default (auto-picked, large) tiles.
    out2, _, _ = dae_forward(x, idx, w1, b1, w2, b2, emb_table)
    out2 = jax.block_until_ready(out2)
    np.testing.assert_allclose(np.asarray(out2), np.asarray(ref), rtol=1e-2, atol=1e-2)

    print("KERNEL_OK")
</pallas_src>

<mosaic_0001>
module attributes {stable_mosaic.version = 11 : i64} {
  func.func @_dae_kernel(%arg0: i32, %arg1: i32, %arg2: memref<16x1024xbf16, #tpu.memory_space<vmem>>, %arg3: memref<1024x256xbf16, #tpu.memory_space<vmem>>, %arg4: memref<1x256xf32, #tpu.memory_space<vmem>>, %arg5: memref<256x128xf32, #tpu.memory_space<vmem>>, %arg6: memref<1x128xf32, #tpu.memory_space<vmem>>, %arg7: memref<32x1xf32, #tpu.memory_space<vmem>>, %arg8: memref<32x128xf32, #tpu.memory_space<vmem>>, %arg9: memref<32x128xf32, #tpu.memory_space<vmem>>, %arg10: memref<32x256xf32, #tpu.memory_space<vmem>>) attributes {dimension_semantics = [#tpu.dimension_semantics<arbitrary>, #tpu.dimension_semantics<arbitrary>], iteration_bounds = array<i64: 4, 2>, scalar_prefetch = 0 : i64, scratch_operands = 1 : i64, tpu.core_type = #tpu.core_type<tc>, window_params = [{transform_indices = @transform_0, window_bounds = array<i64: 16, 1024>}, {transform_indices = @transform_1, window_bounds = array<i64: 1024, 256>}, {pipeline_mode = #tpu.pipeline_mode<synchronous>, transform_indices = @transform_2, window_bounds = array<i64: 1, 256>}, {pipeline_mode = #tpu.pipeline_mode<synchronous>, transform_indices = @transform_3, window_bounds = array<i64: 256, 128>}, {pipeline_mode = #tpu.pipeline_mode<synchronous>, transform_indices = @transform_4, window_bounds = array<i64: 1, 128>}, {pipeline_mode = #tpu.pipeline_mode<synchronous>, transform_indices = @transform_5, window_bounds = array<i64: 32, 1>}, {pipeline_mode = #tpu.pipeline_mode<synchronous>, transform_indices = @transform_6, window_bounds = array<i64: 32, 128>}, {pipeline_mode = #tpu.pipeline_mode<synchronous>, transform_indices = @transform_7, window_bounds = array<i64: 32, 128>}]} {
    %c16_i32 = arith.constant 16 : i32
    %0 = arith.muli %arg1, %c16_i32 : i32
    %1 = tpu.assume_multiple %0, 16 : i32
    %c0_i32 = arith.constant 0 : i32
    %2 = arith.cmpi eq, %arg0, %c0_i32 : i32
    %3 = arith.extui %2 : i1 to i32
    %c0_i32_0 = arith.constant 0 : i32
    %4 = arith.cmpi ne, %3, %c0_i32_0 : i32
    scf.if %4 {
      %cst_7 = arith.constant 0.000000e+00 : f32
      %16 = vector.broadcast %cst_7 : f32 to vector<16x256xf32>
      %17 = arith.index_cast %1 : i32 to index
      %c0_8 = arith.constant 0 : index
      %18 = vector.load %arg10[%17, %c0_8] : memref<32x256xf32, #tpu.memory_space<vmem>>, vector<16x256xf32>
      tpu.vector_store %arg10[%17, %c0_8], %16 {strides = array<i32>} : memref<32x256xf32, #tpu.memory_space<vmem>>, vector<16x256xf32>,
    } else {
    }
    %5 = arith.index_cast %1 : i32 to index
    %c0 = arith.constant 0 : index
    %6 = vector.load %arg10[%5, %c0] : memref<32x256xf32, #tpu.memory_space<vmem>>, vector<16x256xf32>
    %c0_1 = arith.constant 0 : index
    %c0_2 = arith.constant 0 : index
    %7 = vector.load %arg2[%c0_1, %c0_2] : memref<16x1024xbf16, #tpu.memory_space<vmem>>, vector<16x1024xbf16>
    %c0_3 = arith.constant 0 : index
    %c0_4 = arith.constant 0 : index
    %8 = vector.load %arg3[%c0_3, %c0_4] : memref<1024x256xbf16, #tpu.memory_space<vmem>>, vector<1024x256xbf16>
    %cst = arith.constant dense<0.000000e+00> : vector<16x256xf32>
    %9 = tpu.matmul %7, %8, %cst {dimension_numbers = #tpu.dot_dimension_numbers<[1], [0], [0], [1], [0, 0, 1, 1], [], []>} : vector<16x1024xbf16>, vector<1024x256xbf16>, vector<16x256xf32> -> vector<16x256xf32>
    %10 = arith.addf %6, %9 : vector<16x256xf32>
    %11 = arith.index_cast %1 : i32 to index
    %c0_5 = arith.constant 0 : index
    %12 = vector.load %arg10[%11, %c0_5] : memref<32x256xf32, #tpu.memory_space<vmem>>, vector<16x256xf32>
    tpu.vector_store %arg10[%11, %c0_5], %10 {strides = array<i32>} : memref<32x256xf32, #tpu.memory_space<vmem>>, vector<16x256xf32>,
    %c3_i32 = arith.constant 3 : i32
    %13 = arith.cmpi eq, %arg0, %c3_i32 : i32
    %14 = arith.extui %13 : i1 to i32
    %c0_i32_6 = arith.constant 0 : i32
    %15 = arith.cmpi ne, %14, %c0_i32_6 : i32
    scf.if %15 {
      %16 = arith.index_cast %1 : i32 to index
      %c0_7 = arith.constant 0 : index
      %17 = vector.load %arg10[%16, %c0_7] : memref<32x256xf32, #tpu.memory_space<vmem>>, vector<16x256xf32>
      %18 = arith.index_cast %1 : i32 to index
      %c0_8 = arith.constant 0 : index
      %19 = vector.load %arg7[%18, %c0_8] : memref<32x1xf32, #tpu.memory_space<vmem>>, vector<16x1xf32>
      %20 = vector.broadcast %19 : vector<16x1xf32> to vector<16x256xf32>
      %21 = arith.mulf %17, %20 : vector<16x256xf32>
      %c0_9 = arith.constant 0 : index
      %c0_10 = arith.constant 0 : index
      %22 = vector.load %arg4[%c0_9, %c0_10] : memref<1x256xf32, #tpu.memory_space<vmem>>, vector<1x256xf32>
      %23 = vector.broadcast %22 : vector<1x256xf32> to vector<16x256xf32>
      %24 = arith.addf %21, %23 : vector<16x256xf32>
      %25 = math.tanh %24 : vector<16x256xf32>
      %c0_11 = arith.constant 0 : index
      %c0_12 = arith.constant 0 : index
      %26 = vector.load %arg5[%c0_11, %c0_12] : memref<256x128xf32, #tpu.memory_space<vmem>>, vector<256x128xf32>
      %cst_13 = arith.constant dense<0.000000e+00> : vector<16x128xf32>
      %27 = tpu.matmul %25, %26, %cst_13 {dimension_numbers = #tpu.dot_dimension_numbers<[1], [0], [0], [1], [0, 0, 1, 1], [], []>} : vector<16x256xf32>, vector<256x128xf32>, vector<16x128xf32> -> vector<16x128xf32>
      %c0_14 = arith.constant 0 : index
      %c0_15 = arith.constant 0 : index
      %28 = vector.load %arg6[%c0_14, %c0_15] : memref<1x128xf32, #tpu.memory_space<vmem>>, vector<1x128xf32>
      %29 = vector.broadcast %28 : vector<1x128xf32> to vector<16x128xf32>
      %30 = arith.addf %27, %29 : vector<16x128xf32>
      %31 = arith.index_cast %1 : i32 to index
      %c0_16 = arith.constant 0 : index
      %32 = vector.load %arg8[%31, %c0_16] : memref<32x128xf32, #tpu.memory_space<vmem>>, vector<16x128xf32>
      %33 = arith.addf %30, %32 : vector<16x128xf32>
      %34 = arith.index_cast %1 : i32 to index
      %c0_17 = arith.constant 0 : index
      %35 = vector.load %arg9[%34, %c0_17] : memref<32x128xf32, #tpu.memory_space<vmem>>, vector<16x128xf32>
      tpu.vector_store %arg9[%34, %c0_17], %33 {strides = array<i32>} : memref<32x128xf32, #tpu.memory_space<vmem>>, vector<16x128xf32>,
    } else {
    }
    return
  }
  func.func @transform_0(%arg0: i32, %arg1: i32) -> (i32, i32) {
    %c0_i32 = arith.constant 0 : i32
    return %arg1, %arg0 : i32, i32
  }
  func.func @transform_1(%arg0: i32, %arg1: i32) -> (i32, i32) {
    %c0_i32 = arith.constant 0 : i32
    %c0_i32_0 = arith.constant 0 : i32
    return %arg0, %c0_i32 : i32, i32
  }
  func.func @transform_2(%arg0: i32, %arg1: i32) -> (i32, i32) {
    %c0_i32 = arith.constant 0 : i32
    %c0_i32_0 = arith.constant 0 : i32
    %c0_i32_1 = arith.constant 0 : i32
    return %c0_i32, %c0_i32_0 : i32, i32
  }
  func.func @transform_3(%arg0: i32, %arg1: i32) -> (i32, i32) {
    %c0_i32 = arith.constant 0 : i32
    %c0_i32_0 = arith.constant 0 : i32
    %c0_i32_1 = arith.constant 0 : i32
    return %c0_i32, %c0_i32_0 : i32, i32
  }
  func.func @transform_4(%arg0: i32, %arg1: i32) -> (i32, i32) {
    %c0_i32 = arith.constant 0 : i32
    %c0_i32_0 = arith.constant 0 : i32
    %c0_i32_1 = arith.constant 0 : i32
    return %c0_i32, %c0_i32_0 : i32, i32
  }
  func.func @transform_5(%arg0: i32, %arg1: i32) -> (i32, i32) {
    %c0_i32 = arith.constant 0 : i32
    %c0_i32_0 = arith.constant 0 : i32
    %c0_i32_1 = arith.constant 0 : i32
    return %c0_i32, %c0_i32_0 : i32, i32
  }
  func.func @transform_6(%arg0: i32, %arg1: i32) -> (i32, i32) {
    %c0_i32 = arith.constant 0 : i32
    %c0_i32_0 = arith.constant 0 : i32
    %c0_i32_1 = arith.constant 0 : i32
    return %c0_i32, %c0_i32_0 : i32, i32
  }
  func.func @transform_7(%arg0: i32, %arg1: i32) -> (i32, i32) {
    %c0_i32 = arith.constant 0 : i32
    %c0_i32_0 = arith.constant 0 : i32
    %c0_i32_1 = arith.constant 0 : i32
    return %c0_i32, %c0_i32_0 : i32, i32
  }
}

</mosaic_0001>

<llo_original>
// kernel: dae_forward.1
$region0: #{dae_forward.1}
  #allocation0 [shape = 'u32[]', space=smem, size = 0x4, offset = 0x4, fixed_abs, tag = 'smem constant byte address 0x4 - core index']
  #allocation1 [shape = 'u32[144,128]{1,0:T(1,128)}', space=vmem, size = 0x12000, scoped, tag = 'internal scratch']
  #allocation2 [shape = 'f32[32,256]{1,0:T(8,128)}', space=vmem, size = 0x8000, scoped, tag = 'scratch operand']
  %s0 = inlined_call_operand.vmem [shape: bf16[32,4096], index: 0, kind: input, shape index: {}]
  %s1 = inlined_call_operand.vmem [shape: bf16[4096,256], index: 1, kind: input, shape index: {}]
  %s2 = inlined_call_operand.vmem [shape: f32[1,256], index: 2, kind: input, shape index: {}]
  %s3 = inlined_call_operand.vmem [shape: f32[256,128], index: 3, kind: input, shape index: {}]
  %s4 = inlined_call_operand.vmem [shape: f32[1,128], index: 4, kind: input, shape index: {}]
  %s5 = inlined_call_operand.vmem [shape: f32[32,1], index: 5, kind: input, shape index: {}]
  %s6 = inlined_call_operand.vmem [shape: f32[32,128], index: 6, kind: input, shape index: {}]
  %s7 = inlined_call_operand.hbm [shape: f32[32,128], index: 7, kind: output, shape index: {}]
  %s8 = sld [smem:[#allocation0]]
  $region92: #{dae_forward.1} parent=0
    _
  %s10 = ssub.s32 1, %s8
  %s11 = scalar_select 0, %s10, %s8
  $region1: #{dae_forward.1} parent=0
    #allocation3 [shape = 'u8[65536]{0}', space=vmem, size = 0x10000, scoped, tag = 'input window, operand 0']
    #allocation4 [shape = 'u8[16384]{0}', space=vmem, size = 0x4000, scoped, tag = 'output window, operand 0, single buffered']
    #allocation5 [shape = 's32[2]{0}', space=sflag, size = 0x8, scoped, tag = 'scoped memory for dae_forward.1']
    %12 = vsyncpa [#allocation5], 0
    loop: start=0, step=1, limit=10
    $region2: #{dae_forward.1} parent=1 // loop_pre_header
      _
    $region3: #{dae_forward.1} parent=1 // loop_header
      %s14 = sphi 0, %s18
      %p15 = scmp.ge.s32.totalorder %s14, 10
      %s21 = sphi 0, %s33
      %s22 = sphi 0, %s29
      %s23 = sphi 0, %s21
      %s24 = sphi 0, %s22
      %s25 = sphi 0, %s23
      %s26 = sphi 0, %s24
      %s38 = sphi 0, %s40
      %s41 = sphi 0, %s38
      %s42 = sphi 0, %s41
      %s58 = sphi 0, %s42
      %s64 = sphi 0, %s66
      %s67 = sphi 0, %s64
      %s68 = sphi 0, %s67
      %s84 = sphi 0, %s68
      %s88 = sphi 0, %s88
      %s90 = sphi 0, %s88
      %s91 = sphi 0, %s90
      %s105 = sphi 0, %s91
      %s109 = sphi 0, %s109
      %s111 = sphi 0, %s109
      %s112 = sphi 0, %s111
      %s126 = sphi 0, %s112
      %s130 = sphi 0, %s130
      %s132 = sphi 0, %s130
      %s133 = sphi 0, %s132
      %s147 = sphi 0, %s133
      %s151 = sphi 0, %s151
      %s153 = sphi 0, %s151
      %s154 = sphi 0, %s153
      %s168 = sphi 0, %s154
      %s172 = sphi 0, %s172
      %s174 = sphi 0, %s172
      %s175 = sphi 0, %s174
      %s189 = sphi 0, %s175
      %s193 = sphi 0, %s193
      %s195 = sphi 0, %s193
      %s196 = sphi 0, %s195
      %s210 = sphi 0, %s196
    $region4: #{dae_forward.1} parent=1 // loop_header_branch
      %17 = sbr.rel (%p15) target = $region8
    $region5: #{dae_forward.1} parent=1 // loop_body
      %s19 = ssub.s32 %s14, 1
      %s20 = ssub.s32 %s14, 2
      %s27 = sadd.s32 1, %s22
      %p28 = scmp.ge.s32.totalorder %s27, 2
      %s29 = scalar_select %p28, 0, %s27
      %s30 = sadd.s32 1, %s21
      %s31 = scalar_select %p28, %s30, %s21
      %p32 = scmp.ge.s32.totalorder %s31, 4
      %s33 = scalar_select %p32, 0, %s31
      %s34 = ssub.s32 %s22, %s29
      %s35 = ssub.s32 %s21, %s33
      %s36 = sor.u32 %s34, %s35
      %p37 = scmp.eq.s32.totalorder %s36, 0
      %s39 = sadd.s32 %s38, 1
      %s40 = scalar_select %p37, %s38, %s39
      %p43 = pneg %p37
      %p44 = scmp.eq.s32.totalorder %s14, 7
      %p45 = por %p43, %p44
      %p46 = scmp.ne.s32.totalorder %s38, %s41
      %p47 = scmp.eq.s32.totalorder %s14, 0
      %p48 = por %p46, %p47
      %p49 = scmp.ne.s32.totalorder %s38, %s41
      %p50 = scmp.eq.s32.totalorder %s19, 7
      %p51 = por %p49, %p50
      %p52 = scmp.ne.s32.totalorder %s41, %s42
      %p53 = scmp.eq.s32.totalorder %s19, 0
      %p54 = por %p52, %p53
      %p55 = scmp.ne.s32.totalorder %s41, %s42
      %p56 = scmp.eq.s32.totalorder %s20, 7
      %p57 = por %p55, %p56
      %p59 = scmp.ne.s32.totalorder %s42, %s58
      %p60 = scmp.eq.s32.totalorder %s20, 0
      %p61 = por %p59, %p60
      %s62 = ssub.s32 %s21, %s33
      %p63 = scmp.eq.s32.totalorder %s62, 0
      %s65 = sadd.s32 %s64, 1
      %s66 = scalar_select %p63, %s64, %s65
      %p69 = pneg %p63
      %p70 = scmp.eq.s32.totalorder %s14, 7
      %p71 = por %p69, %p70
      %p72 = scmp.ne.s32.totalorder %s64, %s67
      %p73 = scmp.eq.s32.totalorder %s14, 0
      %p74 = por %p72, %p73
      %p75 = scmp.ne.s32.totalorder %s64, %s67
      %p76 = scmp.eq.s32.totalorder %s19, 7
      %p77 = por %p75, %p76
      %p78 = scmp.ne.s32.totalorder %s67, %s68
      %p79 = scmp.eq.s32.totalorder %s19, 0
      %p80 = por %p78, %p79
      %p81 = scmp.ne.s32.totalorder %s67, %s68
      %p82 = scmp.eq.s32.totalorder %s20, 7
      %p83 = por %p81, %p82
      %p85 = scmp.ne.s32.totalorder %s68, %s84
      %p86 = scmp.eq.s32.totalorder %s20, 0
      %p87 = por %p85, %p86
      %s89 = sadd.s32 %s88, 1
      %p92 = scmp.eq.s32.totalorder %s14, 7
      %p93 = scmp.ne.s32.totalorder %s88, %s90
      %p94 = scmp.eq.s32.totalorder %s14, 0
      %p95 = por %p93, %p94
      %p96 = scmp.ne.s32.totalorder %s88, %s90
      %p97 = scmp.eq.s32.totalorder %s19, 7
      %p98 = por %p96, %p97
      %p99 = scmp.ne.s32.totalorder %s90, %s91
      %p100 = scmp.eq.s32.totalorder %s19, 0
      %p101 = por %p99, %p100
      %p102 = scmp.ne.s32.totalorder %s90, %s91
      %p103 = scmp.eq.s32.totalorder %s20, 7
      %p104 = por %p102, %p103
      %p106 = scmp.ne.s32.totalorder %s91, %s105
      %p107 = scmp.eq.s32.totalorder %s20, 0
      %p108 = por %p106, %p107
      %s110 = sadd.s32 %s109, 1
      %p113 = scmp.eq.s32.totalorder %s14, 7
      %p114 = scmp.ne.s32.totalorder %s109, %s111
      %p115 = scmp.eq.s32.totalorder %s14, 0
      %p116 = por %p114, %p115
      %p117 = scmp.ne.s32.totalorder %s109, %s111
      %p118 = scmp.eq.s32.totalorder %s19, 7
      %p119 = por %p117, %p118
      %p120 = scmp.ne.s32.totalorder %s111, %s112
      %p121 = scmp.eq.s32.totalorder %s19, 0
      %p122 = por %p120, %p121
      %p123 = scmp.ne.s32.totalorder %s111, %s112
      %p124 = scmp.eq.s32.totalorder %s20, 7
      %p125 = por %p123, %p124
      %p127 = scmp.ne.s32.totalorder %s112, %s126
      %p128 = scmp.eq.s32.totalorder %s20, 0
      %p129 = por %p127, %p128
      %s131 = sadd.s32 %s130, 1
      %p134 = scmp.eq.s32.totalorder %s14, 7
      %p135 = scmp.ne.s32.totalorder %s130, %s132
      %p136 = scmp.eq.s32.totalorder %s14, 0
      %p137 = por %p135, %p136
      %p138 = scmp.ne.s32.totalorder %s130, %s132
      %p139 = scmp.eq.s32.totalorder %s19, 7
      %p140 = por %p138, %p139
      %p141 = scmp.ne.s32.totalorder %s132, %s133
      %p142 = scmp.eq.s32.totalorder %s19, 0
      %p143 = por %p141, %p142
      %p144 = scmp.ne.s32.totalorder %s132, %s133
      %p145 = scmp.eq.s32.totalorder %s20, 7
      %p146 = por %p144, %p145
      %p148 = scmp.ne.s32.totalorder %s133, %s147
      %p149 = scmp.eq.s32.totalorder %s20, 0
      %p150 = por %p148, %p149
      %s152 = sadd.s32 %s151, 1
      %p155 = scmp.eq.s32.totalorder %s14, 7
      %p156 = scmp.ne.s32.totalorder %s151, %s153
      %p157 = scmp.eq.s32.totalorder %s14, 0
      %p158 = por %p156, %p157
      %p159 = scmp.ne.s32.totalorder %s151, %s153
      %p160 = scmp.eq.s32.totalorder %s19, 7
      %p161 = por %p159, %p160
      %p162 = scmp.ne.s32.totalorder %s153, %s154
      %p163 = scmp.eq.s32.totalorder %s19, 0
      %p164 = por %p162, %p163
      %p165 = scmp.ne.s32.totalorder %s153, %s154
      %p166 = scmp.eq.s32.totalorder %s20, 7
      %p167 = por %p165, %p166
      %p169 = scmp.ne.s32.totalorder %s154, %s168
      %p170 = scmp.eq.s32.totalorder %s20, 0
      %p171 = por %p169, %p170
      %s173 = sadd.s32 %s172, 1
      %p176 = scmp.eq.s32.totalorder %s14, 7
      %p177 = scmp.ne.s32.totalorder %s172, %s174
      %p178 = scmp.eq.s32.totalorder %s14, 0
      %p179 = por %p177, %p178
      %p180 = scmp.ne.s32.totalorder %s172, %s174
      %p181 = scmp.eq.s32.totalorder %s19, 7
      %p182 = por %p180, %p181
      %p183 = scmp.ne.s32.totalorder %s174, %s175
      %p184 = scmp.eq.s32.totalorder %s19, 0
      %p185 = por %p183, %p184
      %p186 = scmp.ne.s32.totalorder %s174, %s175
      %p187 = scmp.eq.s32.totalorder %s20, 7
      %p188 = por %p186, %p187
      %p190 = scmp.ne.s32.totalorder %s175, %s189
      %p191 = scmp.eq.s32.totalorder %s20, 0
      %p192 = por %p190, %p191
      %s194 = sadd.s32 %s193, 1
      %p197 = scmp.eq.s32.totalorder %s14, 7
      %p198 = scmp.ne.s32.totalorder %s193, %s195
      %p199 = scmp.eq.s32.totalorder %s14, 0
      %p200 = por %p198, %p199
      %p201 = scmp.ne.s32.totalorder %s193, %s195
      %p202 = scmp.eq.s32.totalorder %s19, 7
      %p203 = por %p201, %p202
      %p204 = scmp.ne.s32.totalorder %s195, %s196
      %p205 = scmp.eq.s32.totalorder %s19, 0
      %p206 = por %p204, %p205
      %p207 = scmp.ne.s32.totalorder %s195, %s196
      %p208 = scmp.eq.s32.totalorder %s20, 7
      %p209 = por %p207, %p208
      %p211 = scmp.ne.s32.totalorder %s196, %s210
      %p212 = scmp.eq.s32.totalorder %s20, 0
      %p213 = por %p211, %p212
      %p214 = scmp.le.s32.totalorder 1, %s14
      %p215 = scmp.lt.s32.totalorder %s14, 9
      %p216 = pnand %p214, %p215
      %p217 = pneg %p216
      // Predicated region
      $region9: #{dae_forward.1} parent=5 // pred_check
        _
      $region10: #{dae_forward.1} parent=5 // pred_check_branch
        %219 = sbr.rel (%p216) target = $region12
      $region11: #{dae_forward.1} parent=5 // pred_region
        %s220 = ssub.s32 %s14, 1
        // Predicated region
        $region13: #{dae_forward.1} parent=11 // pred_check
          %p221 = pneg %p101
        $region14: #{dae_forward.1} parent=11 // pred_check_branch
          %223 = sbr.rel (%p221) target = $region16
        $region15: #{dae_forward.1} parent=11 // pred_region
          _
        $region16: #{dae_forward.1} parent=11 // pred_fallthru
          _
        // Predicated region
        $region17: #{dae_forward.1} parent=11 // pred_check
          %p224 = pneg %p122
        $region18: #{dae_forward.1} parent=11 // pred_check_branch
          %226 = sbr.rel (%p224) target = $region20
        $region19: #{dae_forward.1} parent=11 // pred_region
          _
        $region20: #{dae_forward.1} parent=11 // pred_fallthru
          _
        // Predicated region
        $region21: #{dae_forward.1} parent=11 // pred_check
          %p227 = pneg %p143
        $region22: #{dae_forward.1} parent=11 // pred_check_branch
          %229 = sbr.rel (%p227) target = $region24
        $region23: #{dae_forward.1} parent=11 // pred_region
          _
        $region24: #{dae_forward.1} parent=11 // pred_fallthru
          _
        // Predicated region
        $region25: #{dae_forward.1} parent=11 // pred_check
          %p230 = pneg %p164
        $region26: #{dae_forward.1} parent=11 // pred_check_branch
          %232 = sbr.rel (%p230) target = $region28
        $region27: #{dae_forward.1} parent=11 // pred_region
          _
        $region28: #{dae_forward.1} parent=11 // pred_fallthru
          _
        // Predicated region
        $region29: #{dae_forward.1} parent=11 // pred_check
          %p233 = pneg %p185
        $region30: #{dae_forward.1} parent=11 // pred_check_branch
          %235 = sbr.rel (%p233) target = $region32
        $region31: #{dae_forward.1} parent=11 // pred_region
          _
        $region32: #{dae_forward.1} parent=11 // pred_fallthru
          _
      $region12: #{dae_forward.1} parent=5 // pred_fallthru
        _
      %p236 = scmp.lt.s32.totalorder %s14, 8
      // Predicated region
      $region33: #{dae_forward.1} parent=5 // pred_check
        %p237 = pneg %p236
      $region34: #{dae_forward.1} parent=5 // pred_check_branch
        %239 = sbr.rel (%p237) target = $region36
      $region35: #{dae_forward.1} parent=5 // pred_region
        // Predicated region
        $region37: #{dae_forward.1} parent=35 // pred_check
          %p240 = pneg %p48
        $region38: #{dae_forward.1} parent=35 // pred_check_branch
          %242 = sbr.rel (%p240) target = $region40
        $region39: #{dae_forward.1} parent=35 // pred_region
          %s243 = sand.u32 %s38, 1
          %s244 = sand.u32 %s38, 1
          %s245 = smul.addr %s244, 64
          %s246 = scalar_lea.vmem [#allocation3], %s245
          %s247 = smul.u32 2, %s22
          %s248 = smul.u32 8, %s21
          %s249 = smul.addr %s247, 32
          %s250 = sadd.s32 %s248, %s249
          %s251 = smul.addr %s250, 4
          %s252 = scalar_lea.vmem %s0, %s251
          // Predicated region
          $region41: #{dae_forward.1} parent=39 // pred_check
            _
          $region42: #{dae_forward.1} parent=39 // pred_check_branch
            %254 = sbr.rel (0) target = $region44
          $region43: #{dae_forward.1} parent=39 // pred_region
            // Predicated region
            $region45: #{dae_forward.1} parent=43 // pred_check
              _
            $region46: #{dae_forward.1} parent=43 // pred_check_branch
              %256 = sbr.rel (0) target = $region48
            $region47: #{dae_forward.1} parent=43 // pred_region
              loop: start=0, step=1, limit=1
              $region49: #{dae_forward.1} parent=47 // loop_pre_header
                _
              $region50: #{dae_forward.1} parent=47 // loop_header
                %s258 = sphi 0, %s262
                %p259 = scmp.ge.s32.totalorder %s258, 1
                %s263 = sphi %s252, %s252
                %s264 = sphi %s246, %s246
              $region51: #{dae_forward.1} parent=47 // loop_header_branch
                %261 = sbr.rel (%p259) target = $region55
              $region52: #{dae_forward.1} parent=47 // loop_body
                %v265 = vld [vmem:[%s263] sm:$0xff]
                %266 = vst [vmem:[%s264] sm:$0xff] %v265
                %v267 = vld [vmem:[%s263 + $0x8] sm:$0xff]
                %268 = vst [vmem:[%s264 + $0x8] sm:$0xff] %v267
                %v269 = vld [vmem:[%s263 + $0x10] sm:$0xff]
                %270 = vst [vmem:[%s264 + $0x10] sm:$0xff] %v269
                %v271 = vld [vmem:[%s263 + $0x18] sm:$0xff]
                %272 = vst [vmem:[%s264 + $0x18] sm:$0xff] %v271
                %v273 = vld [vmem:[%s263 + $0x80] sm:$0xff]
                %274 = vst [vmem:[%s264 + $0x20] sm:$0xff] %v273
                %v275 = vld [vmem:[%s263 + $0x88] sm:$0xff]
                %276 = vst [vmem:[%s264 + $0x28] sm:$0xff] %v275
                %v277 = vld [vmem:[%s263 + $0x90] sm:$0xff]
                %278 = vst [vmem:[%s264 + $0x30] sm:$0xff] %v277
                %v279 = vld [vmem:[%s263 + $0x98] sm:$0xff]
                %280 = vst [vmem:[%s264 + $0x38] sm:$0xff] %v279
              $region53: #{dae_forward.1} parent=47 // loop_footer
                %s262 = sadd.s32 1, %s258
              $region54: #{dae_forward.1} parent=47 // loop_footer_branch
                %257 = sbr.rel target = $region50
              $region55: #{dae_forward.1} parent=47 // loop_exit
                _
            $region48: #{dae_forward.1} parent=43 // pred_fallthru
              _
            // Predicated region
            $region56: #{dae_forward.1} parent=43 // pred_check
              _
            $region57: #{dae_forward.1} parent=43 // pred_check_branch
              %282 = sbr.rel target = $region59
            $region58: #{dae_forward.1} parent=43 // pred_region
              _
            $region59: #{dae_forward.1} parent=43 // pred_fallthru
              _
          $region44: #{dae_forward.1} parent=39 // pred_fallthru
            _
          %283 = vnop
        $region40: #{dae_forward.1} parent=35 // pred_fallthru
          _
        // Predicated region
        $region60: #{dae_forward.1} parent=35 // pred_check
          %p284 = pneg %p74
        $region61: #{dae_forward.1} parent=35 // pred_check_branch
          %286 = sbr.rel (%p284) target = $region63
        $region62: #{dae_forward.1} parent=35 // pred_region
          %s287 = smul.u32 128, %s21
          %p288 = scmp.lt.s32.totalorder %s287, 511
          %s289 = scalar_select %p288, %s287, 511
          %s290 = smul.addr %s289, 2
          %s291 = smul.addr %s290, 4
          %s292 = scalar_lea.vmem %s1, %s291
          %s293 = smul.u32 128, %s21
        $region63: #{dae_forward.1} parent=35 // pred_fallthru
          _
      $region36: #{dae_forward.1} parent=5 // pred_fallthru
        _
      %p294 = scmp.le.s32.totalorder 1, %s14
      %p295 = scmp.lt.s32.totalorder %s14, 9
      %p296 = pnand %p294, %p295
      %p297 = pneg %p296
      // Predicated region
      $region64: #{dae_forward.1} parent=5 // pred_check
        _
      $region65: #{dae_forward.1} parent=5 // pred_check_branch
        %299 = sbr.rel (%p296) target = $region67
      $region66: #{dae_forward.1} parent=5 // pred_region
        %s300 = ssub.s32 %s14, 1
        %s301 = sand.u32 %s41, 1
        %s302 = sand.u32 %s41, 1
        %s303 = smul.addr %s302, 64
        %s304 = scalar_lea.vmem [#allocation3], %s303
        // Predicated region
        $region68: #{dae_forward.1} parent=66 // pred_check
          %p305 = pneg %p54
        $region69: #{dae_forward.1} parent=66 // pred_check_branch
          %307 = sbr.rel (%p305) target = $region71
        $region70: #{dae_forward.1} parent=66 // pred_region
          _
        $region71: #{dae_forward.1} parent=66 // pred_fallthru
          _
        %s308 = sand.u32 %s41, 1
        %s309 = sand.u32 %s41, 1
        %s310 = smul.addr %s309, 64
        %s311 = scalar_lea.vmem [#allocation3], %s310
        %p312 = pneg %p54
        %p313 = pneg %p51
        %s314 = smul.u32 128, %s23
        %p315 = scmp.lt.s32.totalorder %s314, 511
        %s316 = scalar_select %p315, %s314, 511
        %s317 = smul.addr %s316, 2
        %s318 = smul.addr %s317, 4
        %s319 = scalar_lea.vmem %s1, %s318
        %p320 = pneg %p80
        %p321 = pneg %p77
        %p322 = pneg %p101
        %p323 = pneg %p98
        %p324 = pneg %p122
        %p325 = pneg %p119
        %p326 = pneg %p143
        %p327 = pneg %p140
        %p328 = pneg %p164
        %p329 = pneg %p161
        %p330 = pneg %p185
        %p331 = pneg %p182
        %p332 = pneg %p206
        %p333 = pneg %p203
        %s334 = smul.u32 2, %s24
        %s335 = smul.u32 8, %s23
        %s336 = smul.u32 128, %s23
        %p337 = scmp.lt.s32.totalorder %s336, 511
        %s338 = scalar_select %p337, %s336, 511
        %s339 = smul.addr %s338, 2
        %s340 = smul.addr %s339, 4
        %s341 = scalar_lea.vmem %s1, %s340
        %s342 = smul.u32 128, %s23
        %s343 = smul.u32 %s24, 16
        %p344 = scmp.eq.s32.totalorder %s23, 0
        // Predicated region
        $region72: #{dae_forward.1} parent=66 // pred_check
          %p345 = pneg %p344
        $region73: #{dae_forward.1} parent=66 // pred_check_branch
          %347 = sbr.rel (%p345) target = $region75
        $region74: #{dae_forward.1} parent=66 // pred_region
          %s348 = sshra.s32 %s343, 3
          %s349 = sand.u32 %s343, 7
          %s350 = smul.u32 %s348, 2
          %s351 = smul.addr %s350, 8
          %s352 = scalar_lea.vmem [#allocation2], %s351
          %353 = vst [vmem:[%s352] sm:$0xff] 0.0
          %354 = vst [vmem:[%s352 + $0x8] sm:$0xff] 0.0
          %355 = vst [vmem:[%s352 + $0x10] sm:$0xff] 0.0
          %356 = vst [vmem:[%s352 + $0x18] sm:$0xff] 0.0
        $region75: #{dae_forward.1} parent=66 // pred_fallthru
          _
        %s357 = sshra.s32 %s343, 3
        %s358 = sand.u32 %s343, 7
        %s359 = smul.u32 %s357, 2
        %s360 = smul.addr %s359, 8
        %s361 = scalar_lea.vmem [#allocation2], %s360
        %v362 = vld [vmem:[%s361] sm:$0xff]
        %v363 = vld [vmem:[%s361 + $0x8] sm:$0xff]
        %v364 = vld [vmem:[%s361 + $0x10] sm:$0xff]
        %v365 = vld [vmem:[%s361 + $0x18] sm:$0xff]
        %v366 = vld [vmem:[%s304] sm:$0xff]
        %v367 = vld [vmem:[%s304 + $0x8] sm:$0xff]
        %v368 = vld [vmem:[%s304 + $0x10] sm:$0xff]
        %v369 = vld [vmem:[%s304 + $0x18] sm:$0xff]
        %v370 = vld [vmem:[%s304 + $0x20] sm:$0xff]
        %v371 = vld [vmem:[%s304 + $0x28] sm:$0xff]
        %v372 = vld [vmem:[%s304 + $0x30] sm:$0xff]
        %v373 = vld [vmem:[%s304 + $0x38] sm:$0xff]
        %v374 = vld [vmem:[%s341] sm:$0xff]
        %v375 = vld [vmem:[%s341 + $0x8] sm:$0xff]
        %v376 = vld [vmem:[%s341 + $0x10] sm:$0xff]
        %v377 = vld [vmem:[%s341 + $0x18] sm:$0xff]
        %v378 = vld [vmem:[%s341 + $0x20] sm:$0xff]
        %v379 = vld [vmem:[%s341 + $0x28] sm:$0xff]
        %v380 = vld [vmem:[%s341 + $0x30] sm:$0xff]
        %v381 = vld [vmem:[%s341 + $0x38] sm:$0xff]
        %v382 = vld [vmem:[%s341 + $0x40] sm:$0xff]
        %v383 = vld [vmem:[%s341 + $0x48] sm:$0xff]
        %v384 = vld [vmem:[%s341 + $0x50] sm:$0xff]
        %v385 = vld [vmem:[%s341 + $0x58] sm:$0xff]
        %v386 = vld [vmem:[%s341 + $0x60] sm:$0xff]
        %v387 = vld [vmem:[%s341 + $0x68] sm:$0xff]
        %v388 = vld [vmem:[%s341 + $0x70] sm:$0xff]
        %v389 = vld [vmem:[%s341 + $0x78] sm:$0xff]
        %v390 = vld [vmem:[%s341 + $0x80] sm:$0xff]
        %v391 = vld [vmem:[%s341 + $0x88] sm:$0xff]
        %v392 = vld [vmem:[%s341 + $0x90] sm:$0xff]
        %v393 = vld [vmem:[%s341 + $0x98] sm:$0xff]
        %v394 = vld [vmem:[%s341 + $0xa0] sm:$0xff]
        %v395 = vld [vmem:[%s341 + $0xa8] sm:$0xff]
        %v396 = vld [vmem:[%s341 + $0xb0] sm:$0xff]
        %v397 = vld [vmem:[%s341 + $0xb8] sm:$0xff]
        %v398 = vld [vmem:[%s341 + $0xc0] sm:$0xff]
        %v399 = vld [vmem:[%s341 + $0xc8] sm:$0xff]
        %v400 = vld [vmem:[%s341 + $0xd0] sm:$0xff]
        %v401 = vld [vmem:[%s341 + $0xd8] sm:$0xff]
        %v402 = vld [vmem:[%s341 + $0xe0] sm:$0xff]
        %v403 = vld [vmem:[%s341 + $0xe8] sm:$0xff]
        %v404 = vld [vmem:[%s341 + $0xf0] sm:$0xff]
        %v405 = vld [vmem:[%s341 + $0xf8] sm:$0xff]
        %v406 = vld [vmem:[%s341 + $0x100] sm:$0xff]
        %v407 = vld [vmem:[%s341 + $0x108] sm:$0xff]
        %v408 = vld [vmem:[%s341 + $0x110] sm:$0xff]
        %v409 = vld [vmem:[%s341 + $0x118] sm:$0xff]
        %v410 = vld [vmem:[%s341 + $0x120] sm:$0xff]
        %v411 = vld [vmem:[%s341 + $0x128] sm:$0xff]
        %v412 = vld [vmem:[%s341 + $0x130] sm:$0xff]
        %v413 = vld [vmem:[%s341 + $0x138] sm:$0xff]
        %v414 = vld [vmem:[%s341 + $0x140] sm:$0xff]
        %v415 = vld [vmem:[%s341 + $0x148] sm:$0xff]
        %v416 = vld [vmem:[%s341 + $0x150] sm:$0xff]
        %v417 = vld [vmem:[%s341 + $0x158] sm:$0xff]
        %v418 = vld [vmem:[%s341 + $0x160] sm:$0xff]
        %v419 = vld [vmem:[%s341 + $0x168] sm:$0xff]
        %v420 = vld [vmem:[%s341 + $0x170] sm:$0xff]
        %v421 = vld [vmem:[%s341 + $0x178] sm:$0xff]
        %v422 = vld [vmem:[%s341 + $0x180] sm:$0xff]
        %v423 = vld [vmem:[%s341 + $0x188] sm:$0xff]
        %v424 = vld [vmem:[%s341 + $0x190] sm:$0xff]
        %v425 = vld [vmem:[%s341 + $0x198] sm:$0xff]
        %v426 = vld [vmem:[%s341 + $0x1a0] sm:$0xff]
        %v427 = vld [vmem:[%s341 + $0x1a8] sm:$0xff]
        %v428 = vld [vmem:[%s341 + $0x1b0] sm:$0xff]
        %v429 = vld [vmem:[%s341 + $0x1b8] sm:$0xff]
        %v430 = vld [vmem:[%s341 + $0x1c0] sm:$0xff]
        %v431 = vld [vmem:[%s341 + $0x1c8] sm:$0xff]
        %v432 = vld [vmem:[%s341 + $0x1d0] sm:$0xff]
        %v433 = vld [vmem:[%s341 + $0x1d8] sm:$0xff]
        %v434 = vld [vmem:[%s341 + $0x1e0] sm:$0xff]
        %v435 = vld [vmem:[%s341 + $0x1e8] sm:$0xff]
        %v436 = vld [vmem:[%s341 + $0x1f0] sm:$0xff]
        %v437 = vld [vmem:[%s341 + $0x1f8] sm:$0xff]
        %v438 = vld [vmem:[%s341 + $0x200] sm:$0xff]
        %v439 = vld [vmem:[%s341 + $0x208] sm:$0xff]
        %v440 = vld [vmem:[%s341 + $0x210] sm:$0xff]
        %v441 = vld [vmem:[%s341 + $0x218] sm:$0xff]
        %v442 = vld [vmem:[%s341 + $0x220] sm:$0xff]
        %v443 = vld [vmem:[%s341 + $0x228] sm:$0xff]
        %v444 = vld [vmem:[%s341 + $0x230] sm:$0xff]
        %v445 = vld [vmem:[%s341 + $0x238] sm:$0xff]
        %v446 = vld [vmem:[%s341 + $0x240] sm:$0xff]
        %v447 = vld [vmem:[%s341 + $0x248] sm:$0xff]
        %v448 = vld [vmem:[%s341 + $0x250] sm:$0xff]
        %v449 = vld [vmem:[%s341 + $0x258] sm:$0xff]
        %v450 = vld [vmem:[%s341 + $0x260] sm:$0xff]
        %v451 = vld [vmem:[%s341 + $0x268] sm:$0xff]
        %v452 = vld [vmem:[%s341 + $0x270] sm:$0xff]
        %v453 = vld [vmem:[%s341 + $0x278] sm:$0xff]
        %v454 = vld [vmem:[%s341 + $0x280] sm:$0xff]
        %v455 = vld [vmem:[%s341 + $0x288] sm:$0xff]
        %v456 = vld [vmem:[%s341 + $0x290] sm:$0xff]
        %v457 = vld [vmem:[%s341 + $0x298] sm:$0xff]
        %v458 = vld [vmem:[%s341 + $0x2a0] sm:$0xff]
        %v459 = vld [vmem:[%s341 + $0x2a8] sm:$0xff]
        %v460 = vld [vmem:[%s341 + $0x2b0] sm:$0xff]
        %v461 = vld [vmem:[%s341 + $0x2b8] sm:$0xff]
        %v462 = vld [vmem:[%s341 + $0x2c0] sm:$0xff]
        %v463 = vld [vmem:[%s341 + $0x2c8] sm:$0xff]
        %v464 = vld [vmem:[%s341 + $0x2d0] sm:$0xff]
        %v465 = vld [vmem:[%s341 + $0x2d8] sm:$0xff]
        %v466 = vld [vmem:[%s341 + $0x2e0] sm:$0xff]
        %v467 = vld [vmem:[%s341 + $0x2e8] sm:$0xff]
        %v468 = vld [vmem:[%s341 + $0x2f0] sm:$0xff]
        %v469 = vld [vmem:[%s341 + $0x2f8] sm:$0xff]
        %v470 = vld [vmem:[%s341 + $0x300] sm:$0xff]
        %v471 = vld [vmem:[%s341 + $0x308] sm:$0xff]
        %v472 = vld [vmem:[%s341 + $0x310] sm:$0xff]
        %v473 = vld [vmem:[%s341 + $0x318] sm:$0xff]
        %v474 = vld [vmem:[%s341 + $0x320] sm:$0xff]
        %v475 = vld [vmem:[%s341 + $0x328] sm:$0xff]
        %v476 = vld [vmem:[%s341 + $0x330] sm:$0xff]
        %v477 = vld [vmem:[%s341 + $0x338] sm:$0xff]
        %v478 = vld [vmem:[%s341 + $0x340] sm:$0xff]
        %v479 = vld [vmem:[%s341 + $0x348] sm:$0xff]
        %v480 = vld [vmem:[%s341 + $0x350] sm:$0xff]
        %v481 = vld [vmem:[%s341 + $0x358] sm:$0xff]
        %v482 = vld [vmem:[%s341 + $0x360] sm:$0xff]
        %v483 = vld [vmem:[%s341 + $0x368] sm:$0xff]
        %v484 = vld [vmem:[%s341 + $0x370] sm:$0xff]
        %v485 = vld [vmem:[%s341 + $0x378] sm:$0xff]
        %v486 = vld [vmem:[%s341 + $0x380] sm:$0xff]
        %v487 = vld [vmem:[%s341 + $0x388] sm:$0xff]
        %v488 = vld [vmem:[%s341 + $0x390] sm:$0xff]
        %v489 = vld [vmem:[%s341 + $0x398] sm:$0xff]
        %v490 = vld [vmem:[%s341 + $0x3a0] sm:$0xff]
        %v491 = vld [vmem:[%s341 + $0x3a8] sm:$0xff]
        %v492 = vld [vmem:[%s341 + $0x3b0] sm:$0xff]
        %v493 = vld [vmem:[%s341 + $0x3b8] sm:$0xff]
        %v494 = vld [vmem:[%s341 + $0x3c0] sm:$0xff]
        %v495 = vld [vmem:[%s341 + $0x3c8] sm:$0xff]
        %v496 = vld [vmem:[%s341 + $0x3d0] sm:$0xff]
        %v497 = vld [vmem:[%s341 + $0x3d8] sm:$0xff]
        %v498 = vld [vmem:[%s341 + $0x3e0] sm:$0xff]
        %v499 = vld [vmem:[%s341 + $0x3e8] sm:$0xff]
        %v500 = vld [vmem:[%s341 + $0x3f0] sm:$0xff]
        %v501 = vld [vmem:[%s341 + $0x3f8] sm:$0xff]
        %v510 = vunpack.c.l.b16 %v366
        %v511 = vunpack.c.h.b16 %v366
        %v512 = vunpack.c.l.b16 %v367
        %v513 = vunpack.c.h.b16 %v367
        %v514 = vunpack.c.l.b16 %v368
        %v515 = vunpack.c.h.b16 %v368
        %v516 = vunpack.c.l.b16 %v369
        %v517 = vunpack.c.h.b16 %v369
        %v518 = vunpack.c.l.b16 %v370
        %v519 = vunpack.c.h.b16 %v370
        %v520 = vunpack.c.l.b16 %v371
        %v521 = vunpack.c.h.b16 %v371
        %v522 = vunpack.c.l.b16 %v372
        %v523 = vunpack.c.h.b16 %v372
        %v524 = vunpack.c.l.b16 %v373
        %v525 = vunpack.c.h.b16 %v373
        %v526 = vpack.c.b16 %v518, %v510
        %v527 = vpack.c.b16 %v519, %v511
        %v528 = vpack.c.b16 %v520, %v512
        %v529 = vpack.c.b16 %v521, %v513
        %v530 = vpack.c.b16 %v522, %v514
        %v531 = vpack.c.b16 %v523, %v515
        %v532 = vpack.c.b16 %v524, %v516
        %v533 = vpack.c.b16 %v525, %v517
        %v670 = vunpack.c.l.b16 %v374
        %v671 = vunpack.c.h.b16 %v374
        %v672 = vunpack.c.l.b16 %v375
        %v673 = vunpack.c.h.b16 %v375
        %v674 = vunpack.c.l.b16 %v376
        %v675 = vunpack.c.h.b16 %v376
        %v676 = vunpack.c.l.b16 %v377
        %v677 = vunpack.c.h.b16 %v377
        %v678 = vunpack.c.l.b16 %v378
        %v679 = vunpack.c.h.b16 %v378
        %v680 = vunpack.c.l.b16 %v379
        %v681 = vunpack.c.h.b16 %v379
        %v682 = vunpack.c.l.b16 %v380
        %v683 = vunpack.c.h.b16 %v380
        %v684 = vunpack.c.l.b16 %v381
        %v685 = vunpack.c.h.b16 %v381
        %v686 = vunpack.c.l.b16 %v382
        %v687 = vunpack.c.h.b16 %v382
        %v688 = vunpack.c.l.b16 %v383
        %v689 = vunpack.c.h.b16 %v383
        %v690 = vunpack.c.l.b16 %v384
        %v691 = vunpack.c.h.b16 %v384
        %v692 = vunpack.c.l.b16 %v385
        %v693 = vunpack.c.h.b16 %v385
        %v694 = vunpack.c.l.b16 %v386
        %v695 = vunpack.c.h.b16 %v386
        %v696 = vunpack.c.l.b16 %v387
        %v697 = vunpack.c.h.b16 %v387
        %v698 = vunpack.c.l.b16 %v388
        %v699 = vunpack.c.h.b16 %v388
        %v700 = vunpack.c.l.b16 %v389
        %v701 = vunpack.c.h.b16 %v389
        %v702 = vunpack.c.l.b16 %v390
        %v703 = vunpack.c.h.b16 %v390
        %v704 = vunpack.c.l.b16 %v391
        %v705 = vunpack.c.h.b16 %v391
        %v706 = vunpack.c.l.b16 %v392
        %v707 = vunpack.c.h.b16 %v392
        %v708 = vunpack.c.l.b16 %v393
        %v709 = vunpack.c.h.b16 %v393
        %v710 = vunpack.c.l.b16 %v394
        %v711 = vunpack.c.h.b16 %v394
        %v712 = vunpack.c.l.b16 %v395
        %v713 = vunpack.c.h.b16 %v395
        %v714 = vunpack.c.l.b16 %v396
        %v715 = vunpack.c.h.b16 %v396
        %v716 = vunpack.c.l.b16 %v397
        %v717 = vunpack.c.h.b16 %v397
        %v718 = vunpack.c.l.b16 %v398
        %v719 = vunpack.c.h.b16 %v398
        %v720 = vunpack.c.l.b16 %v399
        %v721 = vunpack.c.h.b16 %v399
        %v722 = vunpack.c.l.b16 %v400
        %v723 = vunpack.c.h.b16 %v400
        %v724 = vunpack.c.l.b16 %v401
        %v725 = vunpack.c.h.b16 %v401
        %v726 = vunpack.c.l.b16 %v402
        %v727 = vunpack.c.h.b16 %v402
        %v728 = vunpack.c.l.b16 %v403
        %v729 = vunpack.c.h.b16 %v403
        %v730 = vunpack.c.l.b16 %v404
        %v731 = vunpack.c.h.b16 %v404
        %v732 = vunpack.c.l.b16 %v405
        %v733 = vunpack.c.h.b16 %v405
        %v734 = vunpack.c.l.b16 %v406
        %v735 = vunpack.c.h.b16 %v406
        %v736 = vunpack.c.l.b16 %v407
        %v737 = vunpack.c.h.b16 %v407
        %v738 = vunpack.c.l.b16 %v408
        %v739 = vunpack.c.h.b16 %v408
        %v740 = vunpack.c.l.b16 %v409
        %v741 = vunpack.c.h.b16 %v409
        %v742 = vunpack.c.l.b16 %v410
        %v743 = vunpack.c.h.b16 %v410
        %v744 = vunpack.c.l.b16 %v411
        %v745 = vunpack.c.h.b16 %v411
        %v746 = vunpack.c.l.b16 %v412
        %v747 = vunpack.c.h.b16 %v412
        %v748 = vunpack.c.l.b16 %v413
        %v749 = vunpack.c.h.b16 %v413
        %v750 = vunpack.c.l.b16 %v414
        %v751 = vunpack.c.h.b16 %v414
        %v752 = vunpack.c.l.b16 %v415
        %v753 = vunpack.c.h.b16 %v415
        %v754 = vunpack.c.l.b16 %v416
        %v755 = vunpack.c.h.b16 %v416
        %v756 = vunpack.c.l.b16 %v417
        %v757 = vunpack.c.h.b16 %v417
        %v758 = vunpack.c.l.b16 %v418
        %v759 = vunpack.c.h.b16 %v418
        %v760 = vunpack.c.l.b16 %v419
        %v761 = vunpack.c.h.b16 %v419
        %v762 = vunpack.c.l.b16 %v420
        %v763 = vunpack.c.h.b16 %v420
        %v764 = vunpack.c.l.b16 %v421
        %v765 = vunpack.c.h.b16 %v421
        %v766 = vunpack.c.l.b16 %v422
        %v767 = vunpack.c.h.b16 %v422
        %v768 = vunpack.c.l.b16 %v423
        %v769 = vunpack.c.h.b16 %v423
        %v770 = vunpack.c.l.b16 %v424
        %v771 = vunpack.c.h.b16 %v424
        %v772 = vunpack.c.l.b16 %v425
        %v773 = vunpack.c.h.b16 %v425
        %v774 = vunpack.c.l.b16 %v426
        %v775 = vunpack.c.h.b16 %v426
        %v776 = vunpack.c.l.b16 %v427
        %v777 = vunpack.c.h.b16 %v427
        %v778 = vunpack.c.l.b16 %v428
        %v779 = vunpack.c.h.b16 %v428
        %v780 = vunpack.c.l.b16 %v429
        %v781 = vunpack.c.h.b16 %v429
        %v782 = vunpack.c.l.b16 %v430
        %v783 = vunpack.c.h.b16 %v430
        %v784 = vunpack.c.l.b16 %v431
        %v785 = vunpack.c.h.b16 %v431
        %v786 = vunpack.c.l.b16 %v432
        %v787 = vunpack.c.h.b16 %v432
        %v788 = vunpack.c.l.b16 %v433
        %v789 = vunpack.c.h.b16 %v433
        %v790 = vunpack.c.l.b16 %v434
        %v791 = vunpack.c.h.b16 %v434
        %v792 = vunpack.c.l.b16 %v435
        %v793 = vunpack.c.h.b16 %v435
        %v794 = vunpack.c.l.b16 %v436
        %v795 = vunpack.c.h.b16 %v436
        %v796 = vunpack.c.l.b16 %v437
        %v797 = vunpack.c.h.b16 %v437
        %v798 = vunpack.c.l.b16 %v438
        %v799 = vunpack.c.h.b16 %v438
        %v800 = vunpack.c.l.b16 %v439
        %v801 = vunpack.c.h.b16 %v439
        %v802 = vunpack.c.l.b16 %v440
        %v803 = vunpack.c.h.b16 %v440
        %v804 = vunpack.c.l.b16 %v441
        %v805 = vunpack.c.h.b16 %v441
        %v806 = vunpack.c.l.b16 %v442
        %v807 = vunpack.c.h.b16 %v442
        %v808 = vunpack.c.l.b16 %v443
        %v809 = vunpack.c.h.b16 %v443
        %v810 = vunpack.c.l.b16 %v444
        %v811 = vunpack.c.h.b16 %v444
        %v812 = vunpack.c.l.b16 %v445
        %v813 = vunpack.c.h.b16 %v445
        %v814 = vunpack.c.l.b16 %v446
        %v815 = vunpack.c.h.b16 %v446
        %v816 = vunpack.c.l.b16 %v447
        %v817 = vunpack.c.h.b16 %v447
        %v818 = vunpack.c.l.b16 %v448
        %v819 = vunpack.c.h.b16 %v448
        %v820 = vunpack.c.l.b16 %v449
        %v821 = vunpack.c.h.b16 %v449
        %v822 = vunpack.c.l.b16 %v450
        %v823 = vunpack.c.h.b16 %v450
        %v824 = vunpack.c.l.b16 %v451
        %v825 = vunpack.c.h.b16 %v451
        %v826 = vunpack.c.l.b16 %v452
        %v827 = vunpack.c.h.b16 %v452
        %v828 = vunpack.c.l.b16 %v453
        %v829 = vunpack.c.h.b16 %v453
        %v830 = vunpack.c.l.b16 %v454
        %v831 = vunpack.c.h.b16 %v454
        %v832 = vunpack.c.l.b16 %v455
        %v833 = vunpack.c.h.b16 %v455
        %v834 = vunpack.c.l.b16 %v456
        %v835 = vunpack.c.h.b16 %v456
        %v836 = vunpack.c.l.b16 %v457
        %v837 = vunpack.c.h.b16 %v457
        %v838 = vunpack.c.l.b16 %v458
        %v839 = vunpack.c.h.b16 %v458
        %v840 = vunpack.c.l.b16 %v459
        %v841 = vunpack.c.h.b16 %v459
        %v842 = vunpack.c.l.b16 %v460
        %v843 = vunpack.c.h.b16 %v460
        %v844 = vunpack.c.l.b16 %v461
        %v845 = vunpack.c.h.b16 %v461
        %v846 = vunpack.c.l.b16 %v462
        %v847 = vunpack.c.h.b16 %v462
        %v848 = vunpack.c.l.b16 %v463
        %v849 = vunpack.c.h.b16 %v463
        %v850 = vunpack.c.l.b16 %v464
        %v851 = vunpack.c.h.b16 %v464
        %v852 = vunpack.c.l.b16 %v465
        %v853 = vunpack.c.h.b16 %v465
        %v854 = vunpack.c.l.b16 %v466
        %v855 = vunpack.c.h.b16 %v466
        %v856 = vunpack.c.l.b16 %v467
        %v857 = vunpack.c.h.b16 %v467
        %v858 = vunpack.c.l.b16 %v468
        %v859 = vunpack.c.h.b16 %v468
        %v860 = vunpack.c.l.b16 %v469
        %v861 = vunpack.c.h.b16 %v469
        %v862 = vunpack.c.l.b16 %v470
        %v863 = vunpack.c.h.b16 %v470
        %v864 = vunpack.c.l.b16 %v471
        %v865 = vunpack.c.h.b16 %v471
        %v866 = vunpack.c.l.b16 %v472
        %v867 = vunpack.c.h.b16 %v472
        %v868 = vunpack.c.l.b16 %v473
        %v869 = vunpack.c.h.b16 %v473
        %v870 = vunpack.c.l.b16 %v474
        %v871 = vunpack.c.h.b16 %v474
        %v872 = vunpack.c.l.b16 %v475
        %v873 = vunpack.c.h.b16 %v475
        %v874 = vunpack.c.l.b16 %v476
        %v875 = vunpack.c.h.b16 %v476
        %v876 = vunpack.c.l.b16 %v477
        %v877 = vunpack.c.h.b16 %v477
        %v878 = vunpack.c.l.b16 %v478
        %v879 = vunpack.c.h.b16 %v478
        %v880 = vunpack.c.l.b16 %v479
        %v881 = vunpack.c.h.b16 %v479
        %v882 = vunpack.c.l.b16 %v480
        %v883 = vunpack.c.h.b16 %v480
        %v884 = vunpack.c.l.b16 %v481
        %v885 = vunpack.c.h.b16 %v481
        %v886 = vunpack.c.l.b16 %v482
        %v887 = vunpack.c.h.b16 %v482
        %v888 = vunpack.c.l.b16 %v483
        %v889 = vunpack.c.h.b16 %v483
        %v890 = vunpack.c.l.b16 %v484
        %v891 = vunpack.c.h.b16 %v484
        %v892 = vunpack.c.l.b16 %v485
        %v893 = vunpack.c.h.b16 %v485
        %v894 = vunpack.c.l.b16 %v486
        %v895 = vunpack.c.h.b16 %v486
        %v896 = vunpack.c.l.b16 %v487
        %v897 = vunpack.c.h.b16 %v487
        %v898 = vunpack.c.l.b16 %v488
        %v899 = vunpack.c.h.b16 %v488
        %v900 = vunpack.c.l.b16 %v489
        %v901 = vunpack.c.h.b16 %v489
        %v902 = vunpack.c.l.b16 %v490
        %v903 = vunpack.c.h.b16 %v490
        %v904 = vunpack.c.l.b16 %v491
        %v905 = vunpack.c.h.b16 %v491
        %v906 = vunpack.c.l.b16 %v492
        %v907 = vunpack.c.h.b16 %v492
        %v908 = vunpack.c.l.b16 %v493
        %v909 = vunpack.c.h.b16 %v493
        %v910 = vunpack.c.l.b16 %v494
        %v911 = vunpack.c.h.b16 %v494
        %v912 = vunpack.c.l.b16 %v495
        %v913 = vunpack.c.h.b16 %v495
        %v914 = vunpack.c.l.b16 %v496
        %v915 = vunpack.c.h.b16 %v496
        %v916 = vunpack.c.l.b16 %v497
        %v917 = vunpack.c.h.b16 %v497
        %v918 = vunpack.c.l.b16 %v498
        %v919 = vunpack.c.h.b16 %v498
        %v920 = vunpack.c.l.b16 %v499
        %v921 = vunpack.c.h.b16 %v499
        %v922 = vunpack.c.l.b16 %v500
        %v923 = vunpack.c.h.b16 %v500
        %v924 = vunpack.c.l.b16 %v501
        %v925 = vunpack.c.h.b16 %v501
        %v926 = vpack.c.b16 %v672, %v670
        %v927 = vpack.c.b16 %v673, %v671
        %v928 = vpack.c.b16 %v676, %v674
        %v929 = vpack.c.b16 %v677, %v675
        %v930 = vpack.c.b16 %v680, %v678
        %v931 = vpack.c.b16 %v681, %v679
        %v932 = vpack.c.b16 %v684, %v682
        %v933 = vpack.c.b16 %v685, %v683
        %v934 = vpack.c.b16 %v688, %v686
        %v935 = vpack.c.b16 %v689, %v687
        %v936 = vpack.c.b16 %v692, %v690
        %v937 = vpack.c.b16 %v693, %v691
        %v938 = vpack.c.b16 %v696, %v694
        %v939 = vpack.c.b16 %v697, %v695
        %v940 = vpack.c.b16 %v700, %v698
        %v941 = vpack.c.b16 %v701, %v699
        %v942 = vpack.c.b16 %v704, %v702
        %v943 = vpack.c.b16 %v705, %v703
        %v944 = vpack.c.b16 %v708, %v706
        %v945 = vpack.c.b16 %v709, %v707
        %v946 = vpack.c.b16 %v712, %v710
        %v947 = vpack.c.b16 %v713, %v711
        %v948 = vpack.c.b16 %v716, %v714
        %v949 = vpack.c.b16 %v717, %v715
        %v950 = vpack.c.b16 %v720, %v718
        %v951 = vpack.c.b16 %v721, %v719
        %v952 = vpack.c.b16 %v724, %v722
        %v953 = vpack.c.b16 %v725, %v723
        %v954 = vpack.c.b16 %v728, %v726
        %v955 = vpack.c.b16 %v729, %v727
        %v956 = vpack.c.b16 %v732, %v730
        %v957 = vpack.c.b16 %v733, %v731
        %v958 = vpack.c.b16 %v736, %v734
        %v959 = vpack.c.b16 %v737, %v735
        %v960 = vpack.c.b16 %v740, %v738
        %v961 = vpack.c.b16 %v741, %v739
        %v962 = vpack.c.b16 %v744, %v742
        %v963 = vpack.c.b16 %v745, %v743
        %v964 = vpack.c.b16 %v748, %v746
        %v965 = vpack.c.b16 %v749, %v747
        %v966 = vpack.c.b16 %v752, %v750
        %v967 = vpack.c.b16 %v753, %v751
        %v968 = vpack.c.b16 %v756, %v754
        %v969 = vpack.c.b16 %v757, %v755
        %v970 = vpack.c.b16 %v760, %v758
        %v971 = vpack.c.b16 %v761, %v759
        %v972 = vpack.c.b16 %v764, %v762
        %v973 = vpack.c.b16 %v765, %v763
        %v974 = vpack.c.b16 %v768, %v766
        %v975 = vpack.c.b16 %v769, %v767
        %v976 = vpack.c.b16 %v772, %v770
        %v977 = vpack.c.b16 %v773, %v771
        %v978 = vpack.c.b16 %v776, %v774
        %v979 = vpack.c.b16 %v777, %v775
        %v980 = vpack.c.b16 %v780, %v778
        %v981 = vpack.c.b16 %v781, %v779
        %v982 = vpack.c.b16 %v784, %v782
        %v983 = vpack.c.b16 %v785, %v783
        %v984 = vpack.c.b16 %v788, %v786
        %v985 = vpack.c.b16 %v789, %v787
        %v986 = vpack.c.b16 %v792, %v790
        %v987 = vpack.c.b16 %v793, %v791
        %v988 = vpack.c.b16 %v796, %v794
        %v989 = vpack.c.b16 %v797, %v795
        %v990 = vpack.c.b16 %v800, %v798
        %v991 = vpack.c.b16 %v801, %v799
        %v992 = vpack.c.b16 %v804, %v802
        %v993 = vpack.c.b16 %v805, %v803
        %v994 = vpack.c.b16 %v808, %v806
        %v995 = vpack.c.b16 %v809, %v807
        %v996 = vpack.c.b16 %v812, %v810
        %v997 = vpack.c.b16 %v813, %v811
        %v998 = vpack.c.b16 %v816, %v814
        %v999 = vpack.c.b16 %v817, %v815
        %v1000 = vpack.c.b16 %v820, %v818
        %v1001 = vpack.c.b16 %v821, %v819
        %v1002 = vpack.c.b16 %v824, %v822
        %v1003 = vpack.c.b16 %v825, %v823
        %v1004 = vpack.c.b16 %v828, %v826
        %v1005 = vpack.c.b16 %v829, %v827
        %v1006 = vpack.c.b16 %v832, %v830
        %v1007 = vpack.c.b16 %v833, %v831
        %v1008 = vpack.c.b16 %v836, %v834
        %v1009 = vpack.c.b16 %v837, %v835
        %v1010 = vpack.c.b16 %v840, %v838
        %v1011 = vpack.c.b16 %v841, %v839
        %v1012 = vpack.c.b16 %v844, %v842
        %v1013 = vpack.c.b16 %v845, %v843
        %v1014 = vpack.c.b16 %v848, %v846
        %v1015 = vpack.c.b16 %v849, %v847
        %v1016 = vpack.c.b16 %v852, %v850
        %v1017 = vpack.c.b16 %v853, %v851
        %v1018 = vpack.c.b16 %v856, %v854
        %v1019 = vpack.c.b16 %v857, %v855
        %v1020 = vpack.c.b16 %v860, %v858
        %v1021 = vpack.c.b16 %v861, %v859
        %v1022 = vpack.c.b16 %v864, %v862
        %v1023 = vpack.c.b16 %v865, %v863
        %v1024 = vpack.c.b16 %v868, %v866
        %v1025 = vpack.c.b16 %v869, %v867
        %v1026 = vpack.c.b16 %v872, %v870
        %v1027 = vpack.c.b16 %v873, %v871
        %v1028 = vpack.c.b16 %v876, %v874
        %v1029 = vpack.c.b16 %v877, %v875
        %v1030 = vpack.c.b16 %v880, %v878
        %v1031 = vpack.c.b16 %v881, %v879
        %v1032 = vpack.c.b16 %v884, %v882
        %v1033 = vpack.c.b16 %v885, %v883
        %v1034 = vpack.c.b16 %v888, %v886
        %v1035 = vpack.c.b16 %v889, %v887
        %v1036 = vpack.c.b16 %v892, %v890
        %v1037 = vpack.c.b16 %v893, %v891
        %v1038 = vpack.c.b16 %v896, %v894
        %v1039 = vpack.c.b16 %v897, %v895
        %v1040 = vpack.c.b16 %v900, %v898
        %v1041 = vpack.c.b16 %v901, %v899
        %v1042 = vpack.c.b16 %v904, %v902
        %v1043 = vpack.c.b16 %v905, %v903
        %v1044 = vpack.c.b16 %v908, %v906
        %v1045 = vpack.c.b16 %v909, %v907
        %v1046 = vpack.c.b16 %v912, %v910
        %v1047 = vpack.c.b16 %v913, %v911
        %v1048 = vpack.c.b16 %v916, %v914
        %v1049 = vpack.c.b16 %v917, %v915
        %v1050 = vpack.c.b16 %v920, %v918
        %v1051 = vpack.c.b16 %v921, %v919
        %v1052 = vpack.c.b16 %v924, %v922
        %v1053 = vpack.c.b16 %v925, %v923
        %1182 = vmatprep.subr.bf16.mxu0 %v927
        %1183 = vmatpush1.bf16.msra.mxu0 %v926
        %1184 = vmatprep.subr.bf16.mxu0 %v929
        %1185 = vmatpush1.bf16.msra.mxu0 %v928
        %1186 = vmatprep.subr.bf16.mxu0 %v931
        %1187 = vmatpush1.bf16.msra.mxu0 %v930
        %1188 = vmatprep.subr.bf16.mxu0 %v933
        %1189 = vmatpush1.bf16.msra.mxu0 %v932
        %1190 = vmatprep.subr.bf16.mxu0 %v935
        %1191 = vmatpush1.bf16.msra.mxu0 %v934
        %1192 = vmatprep.subr.bf16.mxu0 %v937
        %1193 = vmatpush1.bf16.msra.mxu0 %v936
        %1194 = vmatprep.subr.bf16.mxu0 %v939
        %1195 = vmatpush1.bf16.msra.mxu0 %v938
        %1196 = vmatprep.subr.bf16.mxu0 %v941
        %1197 = vmatpush1.bf16.msra.mxu0 %v940
        %1198 = vmatprep.subr.bf16.mxu0 %v943
        %1199 = vmatpush1.bf16.msra.mxu0 %v942
        %1200 = vmatprep.subr.bf16.mxu0 %v945
        %1201 = vmatpush1.bf16.msra.mxu0 %v944
        %1202 = vmatprep.subr.bf16.mxu0 %v947
        %1203 = vmatpush1.bf16.msra.mxu0 %v946
        %1204 = vmatprep.subr.bf16.mxu0 %v949
        %1205 = vmatpush1.bf16.msra.mxu0 %v948
        %1206 = vmatprep.subr.bf16.mxu0 %v951
        %1207 = vmatpush1.bf16.msra.mxu0 %v950
        %1208 = vmatprep.subr.bf16.mxu0 %v953
        %1209 = vmatpush1.bf16.msra.mxu0 %v952
        %1210 = vmatprep.subr.bf16.mxu0 %v955
        %1211 = vmatpush1.bf16.msra.mxu0 %v954
        %1212 = vmatprep.subr.bf16.mxu0 %v957
        %1213 = vmatpush1.bf16.msra.mxu0 %v956
        %1214 = vmatprep.mubr.bf16.mxu0 %v527
        %1215 = vmatmul.mubr.bf16.gmra.mrb[0].mxu0 %v526
        %v1216 = vpop.f32.mrb[0].mxu0
        %v1217 = vadd.f32 0.0, %v1216
        %v1218 = vpop.f32.mrb[0].mxu0
        %v1219 = vadd.f32 0.0, %v1218
        %v1220 = vpop.f32.mrb[0].mxu0
        %v1221 = vadd.f32 0.0, %v1220
        %v1222 = vpop.f32.mrb[0].mxu0
        %v1223 = vadd.f32 0.0, %v1222
        %1224 = vdwg.mxu0
        %1225 = vmatprep.subr.bf16.mxu0 %v959
        %1226 = vmatpush1.bf16.msra.mxu0 %v958
        %1227 = vmatprep.subr.bf16.mxu0 %v961
        %1228 = vmatpush1.bf16.msra.mxu0 %v960
        %1229 = vmatprep.subr.bf16.mxu0 %v963
        %1230 = vmatpush1.bf16.msra.mxu0 %v962
        %1231 = vmatprep.subr.bf16.mxu0 %v965
        %1232 = vmatpush1.bf16.msra.mxu0 %v964
        %1233 = vmatprep.subr.bf16.mxu0 %v967
        %1234 = vmatpush1.bf16.msra.mxu0 %v966
        %1235 = vmatprep.subr.bf16.mxu0 %v969
        %1236 = vmatpush1.bf16.msra.mxu0 %v968
        %1237 = vmatprep.subr.bf16.mxu0 %v971
        %1238 = vmatpush1.bf16.msra.mxu0 %v970
        %1239 = vmatprep.subr.bf16.mxu0 %v973
        %1240 = vmatpush1.bf16.msra.mxu0 %v972
        %1241 = vmatprep.subr.bf16.mxu0 %v975
        %1242 = vmatpush1.bf16.msra.mxu0 %v974
        %1243 = vmatprep.subr.bf16.mxu0 %v977
        %1244 = vmatpush1.bf16.msra.mxu0 %v976
        %1245 = vmatprep.subr.bf16.mxu0 %v979
        %1246 = vmatpush1.bf16.msra.mxu0 %v978
        %1247 = vmatprep.subr.bf16.mxu0 %v981
        %1248 = vmatpush1.bf16.msra.mxu0 %v980
        %1249 = vmatprep.subr.bf16.mxu0 %v983
        %1250 = vmatpush1.bf16.msra.mxu0 %v982
        %1251 = vmatprep.subr.bf16.mxu0 %v985
        %1252 = vmatpush1.bf16.msra.mxu0 %v984
        %1253 = vmatprep.subr.bf16.mxu0 %v987
        %1254 = vmatpush1.bf16.msra.mxu0 %v986
        %1255 = vmatprep.subr.bf16.mxu0 %v989
        %1256 = vmatpush1.bf16.msra.mxu0 %v988
        %1257 = vmatprep.mubr.bf16.mxu0 %v529
        %1258 = vmatmul.mubr.bf16.gmra.mrb[0].mxu0 %v528
        %v1259 = vpop.f32.mrb[0].mxu0
        %v1260 = vadd.f32 %v1217, %v1259
        %v1261 = vpop.f32.mrb[0].mxu0
        %v1262 = vadd.f32 %v1219, %v1261
        %v1263 = vpop.f32.mrb[0].mxu0
        %v1264 = vadd.f32 %v1221, %v1263
        %v1265 = vpop.f32.mrb[0].mxu0
        %v1266 = vadd.f32 %v1223, %v1265
        %1267 = vdwg.mxu0
        %1268 = vmatprep.subr.bf16.mxu0 %v991
        %1269 = vmatpush1.bf16.msra.mxu0 %v990
        %1270 = vmatprep.subr.bf16.mxu0 %v993
        %1271 = vmatpush1.bf16.msra.mxu0 %v992
        %1272 = vmatprep.subr.bf16.mxu0 %v995
        %1273 = vmatpush1.bf16.msra.mxu0 %v994
        %1274 = vmatprep.subr.bf16.mxu0 %v997
        %1275 = vmatpush1.bf16.msra.mxu0 %v996
        %1276 = vmatprep.subr.bf16.mxu0 %v999
        %1277 = vmatpush1.bf16.msra.mxu0 %v998
        %1278 = vmatprep.subr.bf16.mxu0 %v1001
        %1279 = vmatpush1.bf16.msra.mxu0 %v1000
        %1280 = vmatprep.subr.bf16.mxu0 %v1003
        %1281 = vmatpush1.bf16.msra.mxu0 %v1002
        %1282 = vmatprep.subr.bf16.mxu0 %v1005
        %1283 = vmatpush1.bf16.msra.mxu0 %v1004
        %1284 = vmatprep.subr.bf16.mxu0 %v1007
        %1285 = vmatpush1.bf16.msra.mxu0 %v1006
        %1286 = vmatprep.subr.bf16.mxu0 %v1009
        %1287 = vmatpush1.bf16.msra.mxu0 %v1008
        %1288 = vmatprep.subr.bf16.mxu0 %v1011
        %1289 = vmatpush1.bf16.msra.mxu0 %v1010
        %1290 = vmatprep.subr.bf16.mxu0 %v1013
        %1291 = vmatpush1.bf16.msra.mxu0 %v1012
        %1292 = vmatprep.subr.bf16.mxu0 %v1015
        %1293 = vmatpush1.bf16.msra.mxu0 %v1014
        %1294 = vmatprep.subr.bf16.mxu0 %v1017
        %1295 = vmatpush1.bf16.msra.mxu0 %v1016
        %1296 = vmatprep.subr.bf16.mxu0 %v1019
        %1297 = vmatpush1.bf16.msra.mxu0 %v1018
        %1298 = vmatprep.subr.bf16.mxu0 %v1021
        %1299 = vmatpush1.bf16.msra.mxu0 %v1020
        %1300 = vmatprep.mubr.bf16.mxu0 %v531
        %1301 = vmatmul.mubr.bf16.gmra.mrb[0].mxu0 %v530
        %v1302 = vpop.f32.mrb[0].mxu0
        %v1303 = vadd.f32 %v1260, %v1302
        %v1304 = vpop.f32.mrb[0].mxu0
        %v1305 = vadd.f32 %v1262, %v1304
        %v1306 = vpop.f32.mrb[0].mxu0
        %v1307 = vadd.f32 %v1264, %v1306
        %v1308 = vpop.f32.mrb[0].mxu0
        %v1309 = vadd.f32 %v1266, %v1308
        %1310 = vdwg.mxu0
        %1311 = vmatprep.subr.bf16.mxu0 %v1023
        %1312 = vmatpush1.bf16.msra.mxu0 %v1022
        %1313 = vmatprep.subr.bf16.mxu0 %v1025
        %1314 = vmatpush1.bf16.msra.mxu0 %v1024
        %1315 = vmatprep.subr.bf16.mxu0 %v1027
        %1316 = vmatpush1.bf16.msra.mxu0 %v1026
        %1317 = vmatprep.subr.bf16.mxu0 %v1029
        %1318 = vmatpush1.bf16.msra.mxu0 %v1028
        %1319 = vmatprep.subr.bf16.mxu0 %v1031
        %1320 = vmatpush1.bf16.msra.mxu0 %v1030
        %1321 = vmatprep.subr.bf16.mxu0 %v1033
        %1322 = vmatpush1.bf16.msra.mxu0 %v1032
        %1323 = vmatprep.subr.bf16.mxu0 %v1035
        %1324 = vmatpush1.bf16.msra.mxu0 %v1034
        %1325 = vmatprep.subr.bf16.mxu0 %v1037
        %1326 = vmatpush1.bf16.msra.mxu0 %v1036
        %1327 = vmatprep.subr.bf16.mxu0 %v1039
        %1328 = vmatpush1.bf16.msra.mxu0 %v1038
        %1329 = vmatprep.subr.bf16.mxu0 %v1041
        %1330 = vmatpush1.bf16.msra.mxu0 %v1040
        %1331 = vmatprep.subr.bf16.mxu0 %v1043
        %1332 = vmatpush1.bf16.msra.mxu0 %v1042
        %1333 = vmatprep.subr.bf16.mxu0 %v1045
        %1334 = vmatpush1.bf16.msra.mxu0 %v1044
        %1335 = vmatprep.subr.bf16.mxu0 %v1047
        %1336 = vmatpush1.bf16.msra.mxu0 %v1046
        %1337 = vmatprep.subr.bf16.mxu0 %v1049
        %1338 = vmatpush1.bf16.msra.mxu0 %v1048
        %1339 = vmatprep.subr.bf16.mxu0 %v1051
        %1340 = vmatpush1.bf16.msra.mxu0 %v1050
        %1341 = vmatprep.subr.bf16.mxu0 %v1053
        %1342 = vmatpush1.bf16.msra.mxu0 %v1052
        %1343 = vmatprep.mubr.bf16.mxu0 %v533
        %1344 = vmatmul.mubr.bf16.gmra.mrb[0].mxu0 %v532
        %v1345 = vpop.f32.mrb[0].mxu0
        %v1346 = vadd.f32 %v1303, %v1345
        %v1347 = vpop.f32.mrb[0].mxu0
        %v1348 = vadd.f32 %v1305, %v1347
        %v1349 = vpop.f32.mrb[0].mxu0
        %v1350 = vadd.f32 %v1307, %v1349
        %v1351 = vpop.f32.mrb[0].mxu0
        %v1352 = vadd.f32 %v1309, %v1351
        %1353 = vdwg.mxu0
        %v1354 = vadd.f32 %v362, %v1346
        %v1355 = vadd.f32 %v363, %v1348
        %v1356 = vadd.f32 %v364, %v1350
        %v1357 = vadd.f32 %v365, %v1352
        %1358 = vst [vmem:[%s361] sm:$0xff] %v1354
        %1359 = vst [vmem:[%s361 + $0x8] sm:$0xff] %v1355
        %1360 = vst [vmem:[%s361 + $0x10] sm:$0xff] %v1356
        %1361 = vst [vmem:[%s361 + $0x18] sm:$0xff] %v1357
        %p1362 = scmp.eq.s32.totalorder %s23, 3
        // Predicated region
        $region76: #{dae_forward.1} parent=66 // pred_check
          %p1363 = pneg %p1362
        $region77: #{dae_forward.1} parent=66 // pred_check_branch
          %1365 = sbr.rel (%p1363) target = $region79
        $region78: #{dae_forward.1} parent=66 // pred_region
          %v1366 = vld [vmem:[%s361] sm:$0xff]
          %v1367 = vld [vmem:[%s361 + $0x8] sm:$0xff]
          %v1368 = vld [vmem:[%s361 + $0x10] sm:$0xff]
          %v1369 = vld [vmem:[%s361 + $0x18] sm:$0xff]
          %s1370 = scalar_lea.vmem %s5, %s343
          %v1371 = vld [vmem:[%s1370] sm:$0xff]
          %v1372 = vld [vmem:[%s1370 + $0x8] sm:$0xff]
          %1374 = vset.pattern.permute.xlu0 0
          %1375 = vperm.xlu0 %1374, %v1371
          %v1376 = vpop.permute.xlu0 %1375
          %1379 = vset.pattern.permute.xlu0 0
          %1380 = vperm.xlu0 %1379, %v1372
          %v1381 = vpop.permute.xlu0 %1380
          %v1383 = vmul.f32 %v1366, %v1376
          %v1384 = vmul.f32 %v1367, %v1376
          %v1385 = vmul.f32 %v1368, %v1381
          %v1386 = vmul.f32 %v1369, %v1381
          %v1387 = vld [vmem:[%s2] sm:$0x3]
          %v1389 = vlaneseq
          %v1390 = vshrl.u32 %v1389, 7
          %v1391 = vsub.s32 0, %v1390
          %v1392 = vrot.slane %v1387, %v1391
          %v1393 = vlaneseq
          %v1394 = vshrl.u32 %v1393, 7
          %v1395 = vsub.s32 1, %v1394
          %v1396 = vrot.slane %v1387, %v1395
          %v1399 = vadd.f32 %v1383, %v1392
          %v1400 = vadd.f32 %v1384, %v1396
          %v1401 = vadd.f32 %v1385, %v1392
          %v1402 = vadd.f32 %v1386, %v1396
          %v1403 = vtanh.pop %v1399
          %v1404 = vtanh.pop %v1400
          %v1405 = vtanh.pop %v1401
          %v1406 = vtanh.pop %v1402
          %v1407 = vld [vmem:[%s3] sm:$0xff]
          %v1408 = vld [vmem:[%s3 + $0x8] sm:$0xff]
          %v1409 = vld [vmem:[%s3 + $0x10] sm:$0xff]
          %v1410 = vld [vmem:[%s3 + $0x18] sm:$0xff]
          %v1411 = vld [vmem:[%s3 + $0x20] sm:$0xff]
          %v1412 = vld [vmem:[%s3 + $0x28] sm:$0xff]
          %v1413 = vld [vmem:[%s3 + $0x30] sm:$0xff]
          %v1414 = vld [vmem:[%s3 + $0x38] sm:$0xff]
          %v1415 = vld [vmem:[%s3 + $0x40] sm:$0xff]
          %v1416 = vld [vmem:[%s3 + $0x48] sm:$0xff]
          %v1417 = vld [vmem:[%s3 + $0x50] sm:$0xff]
          %v1418 = vld [vmem:[%s3 + $0x58] sm:$0xff]
          %v1419 = vld [vmem:[%s3 + $0x60] sm:$0xff]
          %v1420 = vld [vmem:[%s3 + $0x68] sm:$0xff]
          %v1421 = vld [vmem:[%s3 + $0x70] sm:$0xff]
          %v1422 = vld [vmem:[%s3 + $0x78] sm:$0xff]
          %v1423 = vld [vmem:[%s3 + $0x80] sm:$0xff]
          %v1424 = vld [vmem:[%s3 + $0x88] sm:$0xff]
          %v1425 = vld [vmem:[%s3 + $0x90] sm:$0xff]
          %v1426 = vld [vmem:[%s3 + $0x98] sm:$0xff]
          %v1427 = vld [vmem:[%s3 + $0xa0] sm:$0xff]
          %v1428 = vld [vmem:[%s3 + $0xa8] sm:$0xff]
          %v1429 = vld [vmem:[%s3 + $0xb0] sm:$0xff]
          %v1430 = vld [vmem:[%s3 + $0xb8] sm:$0xff]
          %v1431 = vld [vmem:[%s3 + $0xc0] sm:$0xff]
          %v1432 = vld [vmem:[%s3 + $0xc8] sm:$0xff]
          %v1433 = vld [vmem:[%s3 + $0xd0] sm:$0xff]
          %v1434 = vld [vmem:[%s3 + $0xd8] sm:$0xff]
          %v1435 = vld [vmem:[%s3 + $0xe0] sm:$0xff]
          %v1436 = vld [vmem:[%s3 + $0xe8] sm:$0xff]
          %v1437 = vld [vmem:[%s3 + $0xf0] sm:$0xff]
          %v1438 = vld [vmem:[%s3 + $0xf8] sm:$0xff]
          %v1439 = vld [vmem:[%s4] sm:$0x1]
          %v1441 = vlaneseq
          %v1442 = vshrl.u32 %v1441, 7
          %v1443 = vsub.s32 0, %v1442
          %v1444 = vrot.slane %v1439, %v1443
          %1446 = vmatprep.subr.mxu0 0.0
          %1447 = vmatpush1.msra.mxu0 %v1407
          %1448 = vmatprep.subr.mxu0 0.0
          %1449 = vmatpush1.msra.mxu0 %v1408
          %1450 = vmatprep.subr.mxu0 0.0
          %1451 = vmatpush1.msra.mxu0 %v1409
          %1452 = vmatprep.subr.mxu0 0.0
          %1453 = vmatpush1.msra.mxu0 %v1410
          %1454 = vmatprep.subr.mxu0 0.0
          %1455 = vmatpush1.msra.mxu0 %v1411
          %1456 = vmatprep.subr.mxu0 0.0
          %1457 = vmatpush1.msra.mxu0 %v1412
          %1458 = vmatprep.subr.mxu0 0.0
          %1459 = vmatpush1.msra.mxu0 %v1413
          %1460 = vmatprep.subr.mxu0 0.0
          %1461 = vmatpush1.msra.mxu0 %v1414
          %1462 = vmatprep.subr.mxu0 0.0
          %1463 = vmatpush1.msra.mxu0 %v1415
          %1464 = vmatprep.subr.mxu0 0.0
          %1465 = vmatpush1.msra.mxu0 %v1416
          %1466 = vmatprep.subr.mxu0 0.0
          %1467 = vmatpush1.msra.mxu0 %v1417
          %1468 = vmatprep.subr.mxu0 0.0
          %1469 = vmatpush1.msra.mxu0 %v1418
          %1470 = vmatprep.subr.mxu0 0.0
          %1471 = vmatpush1.msra.mxu0 %v1419
          %1472 = vmatprep.subr.mxu0 0.0
          %1473 = vmatpush1.msra.mxu0 %v1420
          %1474 = vmatprep.subr.mxu0 0.0
          %1475 = vmatpush1.msra.mxu0 %v1421
          %1476 = vmatprep.subr.mxu0 0.0
          %1477 = vmatpush1.msra.mxu0 %v1422
          %1478 = vmatprep.subr.mxu0 0.0
          %1479 = vmatpush1.msra.mxu0 %v1423
          %1480 = vmatprep.subr.mxu0 0.0
          %1481 = vmatpush1.msra.mxu0 %v1424
          %1482 = vmatprep.subr.mxu0 0.0
          %1483 = vmatpush1.msra.mxu0 %v1425
          %1484 = vmatprep.subr.mxu0 0.0
          %1485 = vmatpush1.msra.mxu0 %v1426
          %1486 = vmatprep.subr.mxu0 0.0
          %1487 = vmatpush1.msra.mxu0 %v1427
          %1488 = vmatprep.subr.mxu0 0.0
          %1489 = vmatpush1.msra.mxu0 %v1428
          %1490 = vmatprep.subr.mxu0 0.0
          %1491 = vmatpush1.msra.mxu0 %v1429
          %1492 = vmatprep.subr.mxu0 0.0
          %1493 = vmatpush1.msra.mxu0 %v1430
          %1494 = vmatprep.subr.mxu0 0.0
          %1495 = vmatpush1.msra.mxu0 %v1431
          %1496 = vmatprep.subr.mxu0 0.0
          %1497 = vmatpush1.msra.mxu0 %v1432
          %1498 = vmatprep.subr.mxu0 0.0
          %1499 = vmatpush1.msra.mxu0 %v1433
          %1500 = vmatprep.subr.mxu0 0.0
          %1501 = vmatpush1.msra.mxu0 %v1434
          %1502 = vmatprep.subr.mxu0 0.0
          %1503 = vmatpush1.msra.mxu0 %v1435
          %1504 = vmatprep.subr.mxu0 0.0
          %1505 = vmatpush1.msra.mxu0 %v1436
          %1506 = vmatprep.subr.mxu0 0.0
          %1507 = vmatpush1.msra.mxu0 %v1437
          %1508 = vmatprep.subr.mxu0 0.0
          %1509 = vmatpush1.msra.mxu0 %v1438
          %1510 = vmatprep.mubr.f32.mxu0 %v1404
          %1511 = vmatmul.mubr.f32.gmra.mrb[0].mxu0 %v1403
          %v1512 = vpop.f32.mrb[0].mxu0
          %v1513 = vadd.f32 %v1444, %v1512
          %v1514 = vpop.f32.mrb[0].mxu0
          %1515 = vmatprep.mubr.f32.mxu0 %v1406
          %1516 = vmatmul.mubr.f32.gmra.mrb[0].mxu0 %v1405
          %v1517 = vpop.f32.mrb[0].mxu0
          %v1518 = vadd.f32 %v1444, %v1517
          %v1519 = vpop.f32.mrb[0].mxu0
          %1520 = vdwg.mxu0
          %s1521 = scalar_lea.vmem %s6, %s343
          %v1522 = vld [vmem:[%s1521] sm:$0xff]
          %v1523 = vld [vmem:[%s1521 + $0x8] sm:$0xff]
          %v1524 = vadd.f32 %v1513, %v1522
          %v1525 = vadd.f32 %v1518, %v1523
          %s1526 = scalar_lea.vmem [#allocation4], %s343
          %1527 = vst [vmem:[%s1526] sm:$0xff] %v1524
          %1528 = vst [vmem:[%s1526 + $0x8] sm:$0xff] %v1525
        $region79: #{dae_forward.1} parent=66 // pred_fallthru
          _
        // Predicated region
        $region80: #{dae_forward.1} parent=66 // pred_check
          %p1529 = pneg %p203
        $region81: #{dae_forward.1} parent=66 // pred_check_branch
          %1531 = sbr.rel (%p1529) target = $region83
        $region82: #{dae_forward.1} parent=66 // pred_region
          %s1533 = ssub.s32 512, 512
          %1534 = vsyncadd [#allocation5], %s1533
          %s1535 = sshll.u32 [#allocation4], 4
          %s1536 = int_to_ptr.vmem [resolvable:$true] %s1535
          %1541 = dma.vmem_to_hbm [thread:$0]  %s1536, 512, %s7, [#allocation5], 128, 128, 8
        $region83: #{dae_forward.1} parent=66 // pred_fallthru
          _
        // Predicated region
        $region84: #{dae_forward.1} parent=66 // pred_check
          %p1542 = pneg %p203
        $region85: #{dae_forward.1} parent=66 // pred_check_branch
          %1544 = sbr.rel (%p1542) target = $region87
        $region86: #{dae_forward.1} parent=66 // pred_region
          %1545 = dma.done [#allocation5], 512
        $region87: #{dae_forward.1} parent=66 // pred_fallthru
          _
      $region67: #{dae_forward.1} parent=5 // pred_fallthru
        _
      %p1546 = scmp.le.s32.totalorder 2, %s14
      // Predicated region
      $region88: #{dae_forward.1} parent=5 // pred_check
        %p1547 = pneg %p1546
      $region89: #{dae_forward.1} parent=5 // pred_check_branch
        %1549 = sbr.rel (%p1547) target = $region91
      $region90: #{dae_forward.1} parent=5 // pred_region
        %s1550 = ssub.s32 %s14, 2
      $region91: #{dae_forward.1} parent=5 // pred_fallthru
        _
    $region6: #{dae_forward.1} parent=1 // loop_footer
      %s18 = sadd.s32 1, %s14
    $region7: #{dae_forward.1} parent=1 // loop_footer_branch
      %13 = sbr.rel target = $region3
    $region8: #{dae_forward.1} parent=1 // loop_exit
      _
    %1551 = vsyncpa [#allocation5], 1
    %s1552 = scalar_lea.sflag [#allocation5], 1
    %1553 = vsyncpa %s1552, 1

</llo_original>
